<compile_context>
chip_gen: v7x
topology: tpu7x:2x2x1
jax: 0.10.0
libtpu: 0.0.40
codegen_flags: <defaults>
</compile_context>

<pallas_src>
import math
import functools

import jax
import jax.numpy as jnp
from jax.experimental import pallas as pl
from jax.experimental.pallas import tpu as pltpu


def _encoder_block_kernel(num_heads, seq_len, hidden, batch_tile):
    """Returns the Pallas kernel body (one grid step == `batch_tile` batch elems)."""
    nh, S, H, bt = num_heads, seq_len, hidden, batch_tile
    d = H // nh
    inv_sqrt_d = 1.0 / math.sqrt(d)

    def kernel(valid_lens_ref,                                   # scalar prefetch (SMEM)
               x_ref, wqkv_ref, wo_ref,                          # attention weights
               w1_ref, b1_ref, w2_ref, b2_ref,                   # FFN weights
               g1_ref, be1_ref, g2_ref, be2_ref,                 # layernorm params
               out_ref):
        step = pl.program_id(0)

        x = x_ref[...].astype(jnp.float32)                       # (bt, S, H)
        x2d = x.reshape(bt * S, H)                                # flatten batch*seq

        # --- fused Q/K/V projection: ONE (bt*S, H) x (H, 3H) MXU matmul ---
        qkv = jnp.dot(x2d.astype(jnp.bfloat16), wqkv_ref[...],
                      preferred_element_type=jnp.float32)        # (bt*S, 3H) f32 acc
        qkv_b = qkv.astype(jnp.bfloat16)

        # single (1, S) column iota reused for every batch element / head
        col = jax.lax.broadcasted_iota(jnp.int32, (1, S), 1)     # (1, S)

        attn_rows = []
        for j in range(bt):                                      # static, tiny
            blk = qkv_b[j * S:(j + 1) * S]                       # (S, 3H)

            # head-major (nh, S, d) views: cheap static lane slices stacked
            # along a new leading (batch-of-heads) axis.
            q = jnp.stack([blk[:, 0 * H + h * d: 0 * H + (h + 1) * d]
                           for h in range(nh)])                  # (nh, S, d) bf16
            k = jnp.stack([blk[:, 1 * H + h * d: 1 * H + (h + 1) * d]
                           for h in range(nh)])
            v = jnp.stack([blk[:, 2 * H + h * d: 2 * H + (h + 1) * d]
                           for h in range(nh)])

            # --- masked scaled dot-product attention, heads batched ---
            scores = jnp.einsum('hqd,hkd->hqk', q, k,
                                preferred_element_type=jnp.float32) * inv_sqrt_d
            vl = valid_lens_ref[step * bt + j]                   # scalar int32
            scores = jnp.where((col < vl)[None], scores, -1e6)
            scores = scores - jnp.max(scores, axis=-1, keepdims=True)
            p = jnp.exp(scores)
            p = p * pl.reciprocal(jnp.sum(p, axis=-1, keepdims=True), approx=True)
            o_heads = jnp.einsum('hqk,hkd->hqd', p.astype(jnp.bfloat16), v,
                                 preferred_element_type=jnp.float32)  # (nh, S, d)

            # repack heads -> (S, H) (lane-axis concat; XLU is idle here)
            attn_rows.append(jnp.concatenate([o_heads[h] for h in range(nh)],
                                             axis=-1))

        attn2d = attn_rows[0] if bt == 1 else jnp.concatenate(attn_rows, axis=0)

        # --- output projection: ONE (bt*S, H) x (H, H) matmul ---
        o2d = jnp.dot(attn2d.astype(jnp.bfloat16), wo_ref[...],
                      preferred_element_type=jnp.float32)        # (bt*S, H)

        # --- Add & LayerNorm (f32 statistics) ---
        def layernorm(z, gamma, beta):
            mu = jnp.mean(z, axis=-1, keepdims=True)
            var = jnp.mean((z - mu) * (z - mu), axis=-1, keepdims=True)
            return (z - mu) * jax.lax.rsqrt(var + 1e-5) * gamma + beta

        y = layernorm(o2d + x2d, g1_ref[...], be1_ref[...])      # (bt*S, H) f32

        # --- position-wise FFN (bf16 operands, f32 accumulate) ---
        h1 = jnp.maximum(
            jnp.dot(y.astype(jnp.bfloat16), w1_ref[...],
                    preferred_element_type=jnp.float32) + b1_ref[...], 0.0)
        h2 = jnp.dot(h1.astype(jnp.bfloat16), w2_ref[...],
                     preferred_element_type=jnp.float32) + b2_ref[...]

        # --- Add & LayerNorm 2 ---
        out = layernorm(h2 + y, g2_ref[...], be2_ref[...])
        # H < 128 -> masked stores; acceptable at this size (see review note).
        out_ref[...] = out.reshape(bt, S, H).astype(out_ref.dtype)

    return kernel


def pack_encoder_params(params, num_heads):
    """One-time weight repack.  Call once at init, NOT per forward step."""
    del num_heads  # packing is head-agnostic: heads are contiguous d-column blocks
    H = params["wq"].shape[0]
    F = params["w1"].shape[1]
    return {
        # fused [Wq | Wk | Wv] -> (H, 3H); head h of projection j lives in
        # columns j*H + h*d : j*H + (h+1)*d.
        "wqkv": jnp.concatenate([params["wq"], params["wk"], params["wv"]],
                                axis=1).astype(jnp.bfloat16),
        "wo": params["wo"].astype(jnp.bfloat16),
        "w1": params["w1"].astype(jnp.bfloat16),
        "w2": params["w2"].astype(jnp.bfloat16),
        "b1": params["b1"].reshape(1, F).astype(jnp.float32),
        "b2": params["b2"].reshape(1, H).astype(jnp.float32),
        "g1": params["ln1_gamma"].reshape(1, H).astype(jnp.float32),
        "be1": params["ln1_beta"].reshape(1, H).astype(jnp.float32),
        "g2": params["ln2_gamma"].reshape(1, H).astype(jnp.float32),
        "be2": params["ln2_beta"].reshape(1, H).astype(jnp.float32),
    }


@functools.partial(jax.jit, static_argnames=("num_heads", "batch_tile"))
def encoder_block_pallas(x, valid_lens, packed, *, num_heads, batch_tile=1):
    B, S, H = x.shape
    F = packed["w1"].shape[1]
    bt = batch_tile
    assert B % bt == 0, "batch_tile must divide batch"

    full = lambda shape: pl.BlockSpec(shape, lambda i, vl: (0,) * len(shape))

    grid_spec = pltpu.PrefetchScalarGridSpec(
        num_scalar_prefetch=1,
        grid=(B // bt,),
        in_specs=[
            pl.BlockSpec((bt, S, H), lambda i, vl: (i, 0, 0)),   # x
            full((H, 3 * H)),                                    # fused W_qkv (bf16)
            full((H, H)),                                        # W_o       (bf16)
            full((H, F)), full((1, F)),                          # W1, b1
            full((F, H)), full((1, H)),                          # W2, b2
            full((1, H)), full((1, H)),                          # ln1 gamma/beta
            full((1, H)), full((1, H)),                          # ln2 gamma/beta
        ],
        out_specs=pl.BlockSpec((bt, S, H), lambda i, vl: (i, 0, 0)),
    )

    kernel = _encoder_block_kernel(num_heads, S, H, bt)
    return pl.pallas_call(
        kernel,
        grid_spec=grid_spec,
        out_shape=jax.ShapeDtypeStruct((B, S, H), jnp.float32),
        compiler_params=pltpu.CompilerParams(
            # disjoint output blocks per step -> parallel is legal and lets
            # v7x shard the batch loop across its 2 TensorCores.
            dimension_semantics=("parallel",),
            vmem_limit_bytes=32 * 1024 * 1024),
    )(valid_lens.astype(jnp.int32),
      x,
      packed["wqkv"], packed["wo"],
      packed["w1"], packed["b1"], packed["w2"], packed["b2"],
      packed["g1"], packed["be1"], packed["g2"], packed["be2"])


def encoder_block_ref(x, valid_lens, params, num_heads):
    """Pure-JAX f32 reference mirroring the PyTorch forward (dropout=identity)."""
    B, S, H = x.shape
    d = H // num_heads
    q = x @ params["wq"]
    k = x @ params["wk"]
    v = x @ params["wv"]

    def split(t):
        return t.reshape(B, S, num_heads, d).transpose(0, 2, 1, 3)  # (B, nh, S, d)

    qh, kh, vh = split(q), split(k), split(v)
    scores = jnp.einsum("bhqd,bhkd->bhqk", qh, kh) / math.sqrt(d)
    keep = jnp.arange(S)[None, None, None, :] < valid_lens[:, None, None, None]
    scores = jnp.where(keep, scores, -1e6)
    attn = jax.nn.softmax(scores, axis=-1)
    o = jnp.einsum("bhqk,bhkd->bhqd", attn, vh)
    o = o.transpose(0, 2, 1, 3).reshape(B, S, H) @ params["wo"]

    def ln(z, g, b):
        mu = z.mean(-1, keepdims=True)
        var = ((z - mu) ** 2).mean(-1, keepdims=True)
        return (z - mu) / jnp.sqrt(var + 1e-5) * g + b

    y = ln(o + x, params["ln1_gamma"], params["ln1_beta"])
    h = jnp.maximum(y @ params["w1"] + params["b1"], 0.0)
    f = h @ params["w2"] + params["b2"]
    return ln(f + y, params["ln2_gamma"], params["ln2_beta"])


if __name__ == "__main__":
    # Module-consistent small shapes:
    # key/query/value/num_hiddens = 32, num_heads = 4,
    # ffn_num_input = 32, ffn_num_hiddens = 64, norm_shape = 32, dropout = 0.0
    B, S, H, NH, FFN = 2, 8, 32, 4, 64

    key = jax.random.PRNGKey(0)
    ks = jax.random.split(key, 8)
    scale = 0.1
    params = {
        "wq": scale * jax.random.normal(ks[0], (H, H), jnp.float32),
        "wk": scale * jax.random.normal(ks[1], (H, H), jnp.float32),
        "wv": scale * jax.random.normal(ks[2], (H, H), jnp.float32),
        "wo": scale * jax.random.normal(ks[3], (H, H), jnp.float32),
        "w1": scale * jax.random.normal(ks[4], (H, FFN), jnp.float32),
        "b1": scale * jax.random.normal(ks[5], (FFN,), jnp.float32),
        "w2": scale * jax.random.normal(ks[6], (FFN, H), jnp.float32),
        "b2": scale * jax.random.normal(ks[7], (H,), jnp.float32),
        "ln1_gamma": jnp.ones((H,), jnp.float32),
        "ln1_beta": jnp.zeros((H,), jnp.float32),
        "ln2_gamma": jnp.ones((H,), jnp.float32),
        "ln2_beta": jnp.zeros((H,), jnp.float32),
    }

    x = jax.random.normal(jax.random.PRNGKey(42), (B, S, H), jnp.float32)
    valid_lens = jnp.array([3, 6], dtype=jnp.int32)

    # One-time repack (hoisted out of the per-call path).
    packed = pack_encoder_params(params, NH)

    # batch_tile=1 keeps a parallel grid of width 2 (one step per v7x TC);
    # for larger B on v5e/v6e, batch_tile>1 amortizes per-step overhead.
    out = encoder_block_pallas(x, valid_lens, packed, num_heads=NH, batch_tile=1)
    out = jax.block_until_ready(out)

    ref = encoder_block_ref(x, valid_lens, params, NH)
    assert out.shape == (B, S, H)
    # bf16 matmul operands + approx softmax reciprocal vs. an f32 reference:
    # tolerance loosened accordingly (statistics are still computed in f32).
    assert jnp.allclose(out, ref, atol=3e-2, rtol=3e-2), (
        f"max abs err = {jnp.max(jnp.abs(out - ref))}")

    print("KERNEL_OK")
</pallas_src>

<mosaic_0001>
module attributes {stable_mosaic.version = 11 : i64} {
  func.func @kernel(%arg0: i32, %arg1: memref<2xi32, #tpu.memory_space<smem>>, %arg2: memref<1x8x32xf32, #tpu.memory_space<vmem>>, %arg3: memref<32x96xbf16, #tpu.memory_space<vmem>>, %arg4: memref<32x32xbf16, #tpu.memory_space<vmem>>, %arg5: memref<32x64xbf16, #tpu.memory_space<vmem>>, %arg6: memref<1x64xf32, #tpu.memory_space<vmem>>, %arg7: memref<64x32xbf16, #tpu.memory_space<vmem>>, %arg8: memref<1x32xf32, #tpu.memory_space<vmem>>, %arg9: memref<1x32xf32, #tpu.memory_space<vmem>>, %arg10: memref<1x32xf32, #tpu.memory_space<vmem>>, %arg11: memref<1x32xf32, #tpu.memory_space<vmem>>, %arg12: memref<1x32xf32, #tpu.memory_space<vmem>>, %arg13: memref<1x8x32xf32, #tpu.memory_space<vmem>>) attributes {dimension_semantics = [#tpu.dimension_semantics<parallel>], iteration_bounds = array<i64: 2>, scalar_prefetch = 1 : i64, scratch_operands = 0 : i64, tpu.core_type = #tpu.core_type<tc>, window_params = [{transform_indices = @transform_0, window_bounds = array<i64: 1, 8, 32>}, {pipeline_mode = #tpu.pipeline_mode<synchronous>, transform_indices = @transform_1, window_bounds = array<i64: 32, 96>}, {pipeline_mode = #tpu.pipeline_mode<synchronous>, transform_indices = @transform_2, window_bounds = array<i64: 32, 32>}, {pipeline_mode = #tpu.pipeline_mode<synchronous>, transform_indices = @transform_3, window_bounds = array<i64: 32, 64>}, {pipeline_mode = #tpu.pipeline_mode<synchronous>, transform_indices = @transform_4, window_bounds = array<i64: 1, 64>}, {pipeline_mode = #tpu.pipeline_mode<synchronous>, transform_indices = @transform_5, window_bounds = array<i64: 64, 32>}, {pipeline_mode = #tpu.pipeline_mode<synchronous>, transform_indices = @transform_6, window_bounds = array<i64: 1, 32>}, {pipeline_mode = #tpu.pipeline_mode<synchronous>, transform_indices = @transform_7, window_bounds = array<i64: 1, 32>}, {pipeline_mode = #tpu.pipeline_mode<synchronous>, transform_indices = @transform_8, window_bounds = array<i64: 1, 32>}, {pipeline_mode = #tpu.pipeline_mode<synchronous>, transform_indices = @transform_9, window_bounds = array<i64: 1, 32>}, {pipeline_mode = #tpu.pipeline_mode<synchronous>, transform_indices = @transform_10, window_bounds = array<i64: 1, 32>}, {transform_indices = @transform_11, window_bounds = array<i64: 1, 8, 32>}]} {
    %c0 = arith.constant 0 : index
    %c0_0 = arith.constant 0 : index
    %c0_1 = arith.constant 0 : index
    %0 = vector.load %arg2[%c0, %c0_0, %c0_1] : memref<1x8x32xf32, #tpu.memory_space<vmem>>, vector<1x8x32xf32>
    %1 = vector.shape_cast %0 : vector<1x8x32xf32> to vector<8x32xf32>
    %2 = arith.truncf %1 : vector<8x32xf32> to vector<8x32xbf16>
    %c0_2 = arith.constant 0 : index
    %c0_3 = arith.constant 0 : index
    %3 = vector.load %arg3[%c0_2, %c0_3] : memref<32x96xbf16, #tpu.memory_space<vmem>>, vector<32x96xbf16>
    %cst = arith.constant dense<0.000000e+00> : vector<8x96xf32>
    %4 = tpu.matmul %2, %3, %cst {dimension_numbers = #tpu.dot_dimension_numbers<[1], [0], [0], [1], [0, 0, 1, 1], [], []>} : vector<8x32xbf16>, vector<32x96xbf16>, vector<8x96xf32> -> vector<8x96xf32>
    %5 = arith.truncf %4 : vector<8x96xf32> to vector<8x96xbf16>
    %6 = tpu.iota {dimensions = array<i32: 1>} : vector<1x8xi32>
    %7 = vector.extract_strided_slice %5 {offsets = [0, 0], sizes = [8, 8], strides = [1, 1]} : vector<8x96xbf16> to vector<8x8xbf16>
    %8 = vector.extract_strided_slice %5 {offsets = [0, 8], sizes = [8, 8], strides = [1, 1]} : vector<8x96xbf16> to vector<8x8xbf16>
    %9 = vector.extract_strided_slice %5 {offsets = [0, 16], sizes = [8, 8], strides = [1, 1]} : vector<8x96xbf16> to vector<8x8xbf16>
    %10 = vector.extract_strided_slice %5 {offsets = [0, 24], sizes = [8, 8], strides = [1, 1]} : vector<8x96xbf16> to vector<8x8xbf16>
    %11 = vector.shape_cast %7 : vector<8x8xbf16> to vector<1x8x8xbf16>
    %12 = vector.shape_cast %8 : vector<8x8xbf16> to vector<1x8x8xbf16>
    %13 = vector.shape_cast %9 : vector<8x8xbf16> to vector<1x8x8xbf16>
    %14 = vector.shape_cast %10 : vector<8x8xbf16> to vector<1x8x8xbf16>
    %15 = tpu.concatenate %11, %12, %13, %14 in 0 : vector<1x8x8xbf16>, vector<1x8x8xbf16>, vector<1x8x8xbf16>, vector<1x8x8xbf16> -> vector<4x8x8xbf16>
    %16 = vector.extract_strided_slice %5 {offsets = [0, 32], sizes = [8, 8], strides = [1, 1]} : vector<8x96xbf16> to vector<8x8xbf16>
    %17 = vector.extract_strided_slice %5 {offsets = [0, 40], sizes = [8, 8], strides = [1, 1]} : vector<8x96xbf16> to vector<8x8xbf16>
    %18 = vector.extract_strided_slice %5 {offsets = [0, 48], sizes = [8, 8], strides = [1, 1]} : vector<8x96xbf16> to vector<8x8xbf16>
    %19 = vector.extract_strided_slice %5 {offsets = [0, 56], sizes = [8, 8], strides = [1, 1]} : vector<8x96xbf16> to vector<8x8xbf16>
    %20 = vector.shape_cast %16 : vector<8x8xbf16> to vector<1x8x8xbf16>
    %21 = vector.shape_cast %17 : vector<8x8xbf16> to vector<1x8x8xbf16>
    %22 = vector.shape_cast %18 : vector<8x8xbf16> to vector<1x8x8xbf16>
    %23 = vector.shape_cast %19 : vector<8x8xbf16> to vector<1x8x8xbf16>
    %24 = tpu.concatenate %20, %21, %22, %23 in 0 : vector<1x8x8xbf16>, vector<1x8x8xbf16>, vector<1x8x8xbf16>, vector<1x8x8xbf16> -> vector<4x8x8xbf16>
    %25 = vector.extract_strided_slice %5 {offsets = [0, 64], sizes = [8, 8], strides = [1, 1]} : vector<8x96xbf16> to vector<8x8xbf16>
    %26 = vector.extract_strided_slice %5 {offsets = [0, 72], sizes = [8, 8], strides = [1, 1]} : vector<8x96xbf16> to vector<8x8xbf16>
    %27 = vector.extract_strided_slice %5 {offsets = [0, 80], sizes = [8, 8], strides = [1, 1]} : vector<8x96xbf16> to vector<8x8xbf16>
    %28 = vector.extract_strided_slice %5 {offsets = [0, 88], sizes = [8, 8], strides = [1, 1]} : vector<8x96xbf16> to vector<8x8xbf16>
    %29 = vector.shape_cast %25 : vector<8x8xbf16> to vector<1x8x8xbf16>
    %30 = vector.shape_cast %26 : vector<8x8xbf16> to vector<1x8x8xbf16>
    %31 = vector.shape_cast %27 : vector<8x8xbf16> to vector<1x8x8xbf16>
    %32 = vector.shape_cast %28 : vector<8x8xbf16> to vector<1x8x8xbf16>
    %33 = tpu.concatenate %29, %30, %31, %32 in 0 : vector<1x8x8xbf16>, vector<1x8x8xbf16>, vector<1x8x8xbf16>, vector<1x8x8xbf16> -> vector<4x8x8xbf16>
    "tpu.trace_start"() <{level = 10 : i32, message = "hqd,hkd->hqk"}> : () -> ()
    %cst_4 = arith.constant dense<0.000000e+00> : vector<4x8x8xf32>
    %34 = tpu.matmul %15, %24, %cst_4 {dimension_numbers = #tpu.dot_dimension_numbers<[2], [2], [1], [1], [0, 0, 0, 1, 1, 1], [0], [0]>} : vector<4x8x8xbf16>, vector<4x8x8xbf16>, vector<4x8x8xf32> -> vector<4x8x8xf32>
    "tpu.trace_stop"() : () -> ()
    %cst_5 = arith.constant 0.353553385 : f32
    %35 = vector.broadcast %cst_5 : f32 to vector<4x8x8xf32>
    %36 = arith.mulf %34, %35 : vector<4x8x8xf32>
    %c1_i32 = arith.constant 1 : i32
    %37 = arith.muli %arg0, %c1_i32 : i32
    %c0_i32 = arith.constant 0 : i32
    %38 = arith.addi %37, %c0_i32 : i32
    %39 = arith.index_cast %38 : i32 to index
    %40 = memref.load %arg1[%39] : memref<2xi32, #tpu.memory_space<smem>>
    %41 = vector.broadcast %40 : i32 to vector<1x8xi32>
    %42 = arith.cmpi slt, %6, %41 : vector<1x8xi32>
    %43 = vector.shape_cast %42 : vector<1x8xi1> to vector<1x1x8xi1>
    %cst_6 = arith.constant -1.000000e+06 : f32
    %44 = vector.shape_cast %43 : vector<1x1x8xi1> to vector<1x1x8xi1>
    %45 = vector.broadcast %44 : vector<1x1x8xi1> to vector<4x8x8xi1>
    %46 = vector.broadcast %cst_6 : f32 to vector<4x8x8xf32>
    %47 = arith.select %45, %36, %46 : vector<4x8x8xi1>, vector<4x8x8xf32>
    %cst_7 = arith.constant dense<0xFF800000> : vector<4x8xf32>
    %48 = vector.multi_reduction <maximumf>, %47, %cst_7 [2] : vector<4x8x8xf32> to vector<4x8xf32>
    %49 = vector.shape_cast %48 : vector<4x8xf32> to vector<4x8x1xf32>
    %50 = vector.broadcast %49 : vector<4x8x1xf32> to vector<4x8x8xf32>
    %51 = arith.subf %47, %50 : vector<4x8x8xf32>
    %52 = math.exp %51 : vector<4x8x8xf32>
    %cst_8 = arith.constant dense<0.000000e+00> : vector<4x8xf32>
    %53 = vector.multi_reduction <add>, %52, %cst_8 [2] : vector<4x8x8xf32> to vector<4x8xf32>
    %54 = vector.shape_cast %53 : vector<4x8xf32> to vector<4x8x1xf32>
    %55 = tpu.reciprocal %54 {approx = true} : vector<4x8x1xf32> -> vector<4x8x1xf32>
    %56 = vector.broadcast %55 : vector<4x8x1xf32> to vector<4x8x8xf32>
    %57 = arith.mulf %52, %56 : vector<4x8x8xf32>
    %58 = arith.truncf %57 : vector<4x8x8xf32> to vector<4x8x8xbf16>
    "tpu.trace_start"() <{level = 10 : i32, message = "hqk,hkd->hqd"}> : () -> ()
    %cst_9 = arith.constant dense<0.000000e+00> : vector<4x8x8xf32>
    %59 = tpu.matmul %58, %33, %cst_9 {dimension_numbers = #tpu.dot_dimension_numbers<[2], [1], [1], [2], [0, 0, 0, 1, 1, 2], [0], [0]>} : vector<4x8x8xbf16>, vector<4x8x8xbf16>, vector<4x8x8xf32> -> vector<4x8x8xf32>
    "tpu.trace_stop"() : () -> ()
    %60 = vector.extract_strided_slice %59 {offsets = [0, 0, 0], sizes = [1, 8, 8], strides = [1, 1, 1]} : vector<4x8x8xf32> to vector<1x8x8xf32>
    %61 = vector.shape_cast %60 : vector<1x8x8xf32> to vector<8x8xf32>
    %62 = vector.extract_strided_slice %59 {offsets = [1, 0, 0], sizes = [1, 8, 8], strides = [1, 1, 1]} : vector<4x8x8xf32> to vector<1x8x8xf32>
    %63 = vector.shape_cast %62 : vector<1x8x8xf32> to vector<8x8xf32>
    %64 = vector.extract_strided_slice %59 {offsets = [2, 0, 0], sizes = [1, 8, 8], strides = [1, 1, 1]} : vector<4x8x8xf32> to vector<1x8x8xf32>
    %65 = vector.shape_cast %64 : vector<1x8x8xf32> to vector<8x8xf32>
    %66 = vector.extract_strided_slice %59 {offsets = [3, 0, 0], sizes = [1, 8, 8], strides = [1, 1, 1]} : vector<4x8x8xf32> to vector<1x8x8xf32>
    %67 = vector.shape_cast %66 : vector<1x8x8xf32> to vector<8x8xf32>
    %68 = tpu.concatenate %61, %63, %65, %67 in 1 : vector<8x8xf32>, vector<8x8xf32>, vector<8x8xf32>, vector<8x8xf32> -> vector<8x32xf32>
    %69 = arith.truncf %68 : vector<8x32xf32> to vector<8x32xbf16>
    %c0_10 = arith.constant 0 : index
    %c0_11 = arith.constant 0 : index
    %70 = vector.load %arg4[%c0_10, %c0_11] : memref<32x32xbf16, #tpu.memory_space<vmem>>, vector<32x32xbf16>
    %cst_12 = arith.constant dense<0.000000e+00> : vector<8x32xf32>
    %71 = tpu.matmul %69, %70, %cst_12 {dimension_numbers = #tpu.dot_dimension_numbers<[1], [0], [0], [1], [0, 0, 1, 1], [], []>} : vector<8x32xbf16>, vector<32x32xbf16>, vector<8x32xf32> -> vector<8x32xf32>
    %72 = arith.addf %71, %1 : vector<8x32xf32>
    %c0_13 = arith.constant 0 : index
    %c0_14 = arith.constant 0 : index
    %73 = vector.load %arg9[%c0_13, %c0_14] : memref<1x32xf32, #tpu.memory_space<vmem>>, vector<1x32xf32>
    %c0_15 = arith.constant 0 : index
    %c0_16 = arith.constant 0 : index
    %74 = vector.load %arg10[%c0_15, %c0_16] : memref<1x32xf32, #tpu.memory_space<vmem>>, vector<1x32xf32>
    %cst_17 = arith.constant dense<0.000000e+00> : vector<8xf32>
    %75 = vector.multi_reduction <add>, %72, %cst_17 [1] : vector<8x32xf32> to vector<8xf32>
    %76 = vector.shape_cast %75 : vector<8xf32> to vector<8x1xf32>
    %cst_18 = arith.constant 3.200000e+01 : f32
    %77 = vector.broadcast %cst_18 : f32 to vector<8x1xf32>
    %78 = arith.divf %76, %77 : vector<8x1xf32>
    %79 = vector.broadcast %78 : vector<8x1xf32> to vector<8x32xf32>
    %80 = arith.subf %72, %79 : vector<8x32xf32>
    %81 = vector.broadcast %78 : vector<8x1xf32> to vector<8x32xf32>
    %82 = arith.subf %72, %81 : vector<8x32xf32>
    %83 = arith.mulf %80, %82 : vector<8x32xf32>
    %cst_19 = arith.constant dense<0.000000e+00> : vector<8xf32>
    %84 = vector.multi_reduction <add>, %83, %cst_19 [1] : vector<8x32xf32> to vector<8xf32>
    %85 = vector.shape_cast %84 : vector<8xf32> to vector<8x1xf32>
    %cst_20 = arith.constant 3.200000e+01 : f32
    %86 = vector.broadcast %cst_20 : f32 to vector<8x1xf32>
    %87 = arith.divf %85, %86 : vector<8x1xf32>
    %88 = vector.broadcast %78 : vector<8x1xf32> to vector<8x32xf32>
    %89 = arith.subf %72, %88 : vector<8x32xf32>
    %cst_21 = arith.constant 9.99999974E-6 : f32
    %90 = vector.broadcast %cst_21 : f32 to vector<8x1xf32>
    %91 = arith.addf %87, %90 : vector<8x1xf32>
    %92 = math.rsqrt %91 : vector<8x1xf32>
    %93 = vector.broadcast %92 : vector<8x1xf32> to vector<8x32xf32>
    %94 = arith.mulf %89, %93 : vector<8x32xf32>
    %95 = vector.broadcast %73 : vector<1x32xf32> to vector<8x32xf32>
    %96 = arith.mulf %94, %95 : vector<8x32xf32>
    %97 = vector.broadcast %74 : vector<1x32xf32> to vector<8x32xf32>
    %98 = arith.addf %96, %97 : vector<8x32xf32>
    %99 = arith.truncf %98 : vector<8x32xf32> to vector<8x32xbf16>
    %c0_22 = arith.constant 0 : index
    %c0_23 = arith.constant 0 : index
    %100 = vector.load %arg5[%c0_22, %c0_23] : memref<32x64xbf16, #tpu.memory_space<vmem>>, vector<32x64xbf16>
    %cst_24 = arith.constant dense<0.000000e+00> : vector<8x64xf32>
    %101 = tpu.matmul %99, %100, %cst_24 {dimension_numbers = #tpu.dot_dimension_numbers<[1], [0], [0], [1], [0, 0, 1, 1], [], []>} : vector<8x32xbf16>, vector<32x64xbf16>, vector<8x64xf32> -> vector<8x64xf32>
    %c0_25 = arith.constant 0 : index
    %c0_26 = arith.constant 0 : index
    %102 = vector.load %arg6[%c0_25, %c0_26] : memref<1x64xf32, #tpu.memory_space<vmem>>, vector<1x64xf32>
    %103 = vector.broadcast %102 : vector<1x64xf32> to vector<8x64xf32>
    %104 = arith.addf %101, %103 : vector<8x64xf32>
    %cst_27 = arith.constant 0.000000e+00 : f32
    %105 = vector.broadcast %cst_27 : f32 to vector<8x64xf32>
    %106 = arith.maximumf %104, %105 : vector<8x64xf32>
    %107 = arith.truncf %106 : vector<8x64xf32> to vector<8x64xbf16>
    %c0_28 = arith.constant 0 : index
    %c0_29 = arith.constant 0 : index
    %108 = vector.load %arg7[%c0_28, %c0_29] : memref<64x32xbf16, #tpu.memory_space<vmem>>, vector<64x32xbf16>
    %cst_30 = arith.constant dense<0.000000e+00> : vector<8x32xf32>
    %109 = tpu.matmul %107, %108, %cst_30 {dimension_numbers = #tpu.dot_dimension_numbers<[1], [0], [0], [1], [0, 0, 1, 1], [], []>} : vector<8x64xbf16>, vector<64x32xbf16>, vector<8x32xf32> -> vector<8x32xf32>
    %c0_31 = arith.constant 0 : index
    %c0_32 = arith.constant 0 : index
    %110 = vector.load %arg8[%c0_31, %c0_32] : memref<1x32xf32, #tpu.memory_space<vmem>>, vector<1x32xf32>
    %111 = vector.broadcast %110 : vector<1x32xf32> to vector<8x32xf32>
    %112 = arith.addf %109, %111 : vector<8x32xf32>
    %113 = arith.addf %112, %98 : vector<8x32xf32>
    %c0_33 = arith.constant 0 : index
    %c0_34 = arith.constant 0 : index
    %114 = vector.load %arg11[%c0_33, %c0_34] : memref<1x32xf32, #tpu.memory_space<vmem>>, vector<1x32xf32>
    %c0_35 = arith.constant 0 : index
    %c0_36 = arith.constant 0 : index
    %115 = vector.load %arg12[%c0_35, %c0_36] : memref<1x32xf32, #tpu.memory_space<vmem>>, vector<1x32xf32>
    %cst_37 = arith.constant dense<0.000000e+00> : vector<8xf32>
    %116 = vector.multi_reduction <add>, %113, %cst_37 [1] : vector<8x32xf32> to vector<8xf32>
    %117 = vector.shape_cast %116 : vector<8xf32> to vector<8x1xf32>
    %cst_38 = arith.constant 3.200000e+01 : f32
    %118 = vector.broadcast %cst_38 : f32 to vector<8x1xf32>
    %119 = arith.divf %117, %118 : vector<8x1xf32>
    %120 = vector.broadcast %119 : vector<8x1xf32> to vector<8x32xf32>
    %121 = arith.subf %113, %120 : vector<8x32xf32>
    %122 = vector.broadcast %119 : vector<8x1xf32> to vector<8x32xf32>
    %123 = arith.subf %113, %122 : vector<8x32xf32>
    %124 = arith.mulf %121, %123 : vector<8x32xf32>
    %cst_39 = arith.constant dense<0.000000e+00> : vector<8xf32>
    %125 = vector.multi_reduction <add>, %124, %cst_39 [1] : vector<8x32xf32> to vector<8xf32>
    %126 = vector.shape_cast %125 : vector<8xf32> to vector<8x1xf32>
    %cst_40 = arith.constant 3.200000e+01 : f32
    %127 = vector.broadcast %cst_40 : f32 to vector<8x1xf32>
    %128 = arith.divf %126, %127 : vector<8x1xf32>
    %129 = vector.broadcast %119 : vector<8x1xf32> to vector<8x32xf32>
    %130 = arith.subf %113, %129 : vector<8x32xf32>
    %cst_41 = arith.constant 9.99999974E-6 : f32
    %131 = vector.broadcast %cst_41 : f32 to vector<8x1xf32>
    %132 = arith.addf %128, %131 : vector<8x1xf32>
    %133 = math.rsqrt %132 : vector<8x1xf32>
    %134 = vector.broadcast %133 : vector<8x1xf32> to vector<8x32xf32>
    %135 = arith.mulf %130, %134 : vector<8x32xf32>
    %136 = vector.broadcast %114 : vector<1x32xf32> to vector<8x32xf32>
    %137 = arith.mulf %135, %136 : vector<8x32xf32>
    %138 = vector.broadcast %115 : vector<1x32xf32> to vector<8x32xf32>
    %139 = arith.addf %137, %138 : vector<8x32xf32>
    %140 = vector.shape_cast %139 : vector<8x32xf32> to vector<1x8x32xf32>
    %c0_42 = arith.constant 0 : index
    %c0_43 = arith.constant 0 : index
    %c0_44 = arith.constant 0 : index
    %141 = vector.load %arg13[%c0_42, %c0_43, %c0_44] : memref<1x8x32xf32, #tpu.memory_space<vmem>>, vector<1x8x32xf32>
    tpu.vector_store %arg13[%c0_42, %c0_43, %c0_44], %140 {strides = array<i32>} : memref<1x8x32xf32, #tpu.memory_space<vmem>>, vector<1x8x32xf32>,
    return
  }
  func.func @transform_0(%arg0: i32, %arg1: memref<2xi32, #tpu.memory_space<smem>>) -> (i32, i32, i32) {
    %c0_i32 = arith.constant 0 : i32
    %c0_i32_0 = arith.constant 0 : i32
    %c0_i32_1 = arith.constant 0 : i32
    return %arg0, %c0_i32, %c0_i32_0 : i32, i32, i32
  }
  func.func @transform_1(%arg0: i32, %arg1: memref<2xi32, #tpu.memory_space<smem>>) -> (i32, i32) {
    %c0_i32 = arith.constant 0 : i32
    %c0_i32_0 = arith.constant 0 : i32
    %c0_i32_1 = arith.constant 0 : i32
    return %c0_i32, %c0_i32_0 : i32, i32
  }
  func.func @transform_2(%arg0: i32, %arg1: memref<2xi32, #tpu.memory_space<smem>>) -> (i32, i32) {
    %c0_i32 = arith.constant 0 : i32
    %c0_i32_0 = arith.constant 0 : i32
    %c0_i32_1 = arith.constant 0 : i32
    return %c0_i32, %c0_i32_0 : i32, i32
  }
  func.func @transform_3(%arg0: i32, %arg1: memref<2xi32, #tpu.memory_space<smem>>) -> (i32, i32) {
    %c0_i32 = arith.constant 0 : i32
    %c0_i32_0 = arith.constant 0 : i32
    %c0_i32_1 = arith.constant 0 : i32
    return %c0_i32, %c0_i32_0 : i32, i32
  }
  func.func @transform_4(%arg0: i32, %arg1: memref<2xi32, #tpu.memory_space<smem>>) -> (i32, i32) {
    %c0_i32 = arith.constant 0 : i32
    %c0_i32_0 = arith.constant 0 : i32
    %c0_i32_1 = arith.constant 0 : i32
    return %c0_i32, %c0_i32_0 : i32, i32
  }
  func.func @transform_5(%arg0: i32, %arg1: memref<2xi32, #tpu.memory_space<smem>>) -> (i32, i32) {
    %c0_i32 = arith.constant 0 : i32
    %c0_i32_0 = arith.constant 0 : i32
    %c0_i32_1 = arith.constant 0 : i32
    return %c0_i32, %c0_i32_0 : i32, i32
  }
  func.func @transform_6(%arg0: i32, %arg1: memref<2xi32, #tpu.memory_space<smem>>) -> (i32, i32) {
    %c0_i32 = arith.constant 0 : i32
    %c0_i32_0 = arith.constant 0 : i32
    %c0_i32_1 = arith.constant 0 : i32
    return %c0_i32, %c0_i32_0 : i32, i32
  }
  func.func @transform_7(%arg0: i32, %arg1: memref<2xi32, #tpu.memory_space<smem>>) -> (i32, i32) {
    %c0_i32 = arith.constant 0 : i32
    %c0_i32_0 = arith.constant 0 : i32
    %c0_i32_1 = arith.constant 0 : i32
    return %c0_i32, %c0_i32_0 : i32, i32
  }
  func.func @transform_8(%arg0: i32, %arg1: memref<2xi32, #tpu.memory_space<smem>>) -> (i32, i32) {
    %c0_i32 = arith.constant 0 : i32
    %c0_i32_0 = arith.constant 0 : i32
    %c0_i32_1 = arith.constant 0 : i32
    return %c0_i32, %c0_i32_0 : i32, i32
  }
  func.func @transform_9(%arg0: i32, %arg1: memref<2xi32, #tpu.memory_space<smem>>) -> (i32, i32) {
    %c0_i32 = arith.constant 0 : i32
    %c0_i32_0 = arith.constant 0 : i32
    %c0_i32_1 = arith.constant 0 : i32
    return %c0_i32, %c0_i32_0 : i32, i32
  }
  func.func @transform_10(%arg0: i32, %arg1: memref<2xi32, #tpu.memory_space<smem>>) -> (i32, i32) {
    %c0_i32 = arith.constant 0 : i32
    %c0_i32_0 = arith.constant 0 : i32
    %c0_i32_1 = arith.constant 0 : i32
    return %c0_i32, %c0_i32_0 : i32, i32
  }
  func.func @transform_11(%arg0: i32, %arg1: memref<2xi32, #tpu.memory_space<smem>>) -> (i32, i32, i32) {
    %c0_i32 = arith.constant 0 : i32
    %c0_i32_0 = arith.constant 0 : i32
    %c0_i32_1 = arith.constant 0 : i32
    return %arg0, %c0_i32, %c0_i32_0 : i32, i32, i32
  }
}

</mosaic_0001>

<llo_original>
// kernel: encoder_block_pallas.1
$region0: #{encoder_block_pallas.1}
  #allocation0 [shape = 'u32[]', space=smem, size = 0x4, offset = 0x4, fixed_abs, tag = 'smem constant byte address 0x4 - core index']
  #allocation1 [shape = 'u32[144,128]{1,0:T(1,128)}', space=vmem, size = 0x12000, scoped, tag = 'internal scratch']
  #allocation2 [shape = 's32[1]{0}', space=sflag, size = 0x4, scoped, tag = 'scoped memory for encoder_block_pallas.1']
  #allocation3 [shape = 'u8[512]{0}', space=smem, size = 0x200, scoped, tag = 'prefetched SMEM operand 0']
  %s0 = inlined_call_operand.vmem [shape: s32[2], index: 0, kind: input, shape index: {}]
  %s1 = inlined_call_operand.vmem [shape: f32[2,8,32], index: 1, kind: input, shape index: {}]
  %s2 = inlined_call_operand.vmem [shape: bf16[32,96], index: 2, kind: input, shape index: {}]
  %s3 = inlined_call_operand.vmem [shape: bf16[32,32], index: 3, kind: input, shape index: {}]
  %s4 = inlined_call_operand.hbm [shape: bf16[32,64], index: 4, kind: input, shape index: {}]
  %s5 = inlined_call_operand.vmem [shape: f32[1,64], index: 5, kind: input, shape index: {}]
  %s6 = inlined_call_operand.vmem [shape: bf16[64,32], index: 6, kind: input, shape index: {}]
  %s7 = inlined_call_operand.vmem [shape: f32[1,32], index: 7, kind: input, shape index: {}]
  %s8 = inlined_call_operand.vmem [shape: f32[1,32], index: 8, kind: input, shape index: {}]
  %s9 = inlined_call_operand.vmem [shape: f32[1,32], index: 9, kind: input, shape index: {}]
  %s10 = inlined_call_operand.vmem [shape: f32[1,32], index: 10, kind: input, shape index: {}]
  %s11 = inlined_call_operand.vmem [shape: f32[1,32], index: 11, kind: input, shape index: {}]
  %s12 = inlined_call_operand.hbm [shape: f32[2,8,32], index: 12, kind: output, shape index: {}]
  %s13 = sld [smem:[#allocation0]]
  $region81: #{encoder_block_pallas.1} parent=0
    _
  %s15 = ssub.s32 1, %s13
  %s16 = scalar_select 0, %s15, %s13
  %s17 = sshll.u32 %s0, 4
  %s18 = int_to_ptr.vmem [resolvable:$true] %s17
  %20 = dma.vmem_to_smem %s18, 16, [#allocation3], [#allocation2]
  %21 = dma.done [#allocation2], 16
  %22 = sfence
  $region1: #{encoder_block_pallas.1} parent=0
    #allocation4 [shape = 'u8[8192]{0}', space=vmem, size = 0x2000, scoped, tag = 'input window, operand 4, single buffered']
    #allocation5 [shape = 's32[2]{0}', space=sflag, size = 0x8, scoped, tag = 'scoped memory for encoder_block_pallas.1']
    #allocation6 [shape = 's32[2]{0}', space=sflag, size = 0x8, scoped, tag = 'scoped memory for encoder_block_pallas.1']
    #allocation7 [shape = 'u8[8192]{0}', space=vmem, size = 0x2000, scoped, tag = 'output window, operand 0']
    %23 = vsyncpa [#allocation5], 0
    %24 = vsyncpa [#allocation6], 0
    %s25 = scalar_lea.sflag [#allocation6], 1
    %26 = vsyncpa %s25, 0
    loop: start=0, step=1, limit=4
    $region2: #{encoder_block_pallas.1} parent=1 // loop_pre_header
      _
    $region3: #{encoder_block_pallas.1} parent=1 // loop_header
      %s28 = sphi 0, %s32
      %p29 = scmp.ge.s32.totalorder %s28, 4
      %s38 = sphi 0, %s40
      %s41 = sphi 0, %s38
      %s42 = sphi 0, %s41
      %s58 = sphi 0, %s42
      %s62 = sphi 0, %s62
      %s64 = sphi 0, %s62
      %s65 = sphi 0, %s64
      %s79 = sphi 0, %s65
      %s83 = sphi 0, %s83
      %s85 = sphi 0, %s83
      %s86 = sphi 0, %s85
      %s100 = sphi 0, %s86
      %s104 = sphi 0, %s104
      %s106 = sphi 0, %s104
      %s107 = sphi 0, %s106
      %s121 = sphi 0, %s107
      %s125 = sphi 0, %s125
      %s127 = sphi 0, %s125
      %s128 = sphi 0, %s127
      %s142 = sphi 0, %s128
      %s146 = sphi 0, %s146
      %s148 = sphi 0, %s146
      %s149 = sphi 0, %s148
      %s163 = sphi 0, %s149
      %s167 = sphi 0, %s167
      %s169 = sphi 0, %s167
      %s170 = sphi 0, %s169
      %s184 = sphi 0, %s170
      %s188 = sphi 0, %s188
      %s190 = sphi 0, %s188
      %s191 = sphi 0, %s190
      %s205 = sphi 0, %s191
      %s209 = sphi 0, %s209
      %s211 = sphi 0, %s209
      %s212 = sphi 0, %s211
      %s226 = sphi 0, %s212
      %s230 = sphi 0, %s230
      %s232 = sphi 0, %s230
      %s233 = sphi 0, %s232
      %s247 = sphi 0, %s233
      %s251 = sphi 0, %s251
      %s253 = sphi 0, %s251
      %s254 = sphi 0, %s253
      %s268 = sphi 0, %s254
      %s274 = sphi 0, %s276
      %s277 = sphi 0, %s274
      %s278 = sphi 0, %s277
      %s294 = sphi 0, %s278
    $region4: #{encoder_block_pallas.1} parent=1 // loop_header_branch
      %31 = sbr.rel (%p29) target = $region8
    $region5: #{encoder_block_pallas.1} parent=1 // loop_body
      %s33 = ssub.s32 %s28, 1
      %s34 = ssub.s32 %s28, 2
      %s35 = sadd.s32 %s28, 1
      %s36 = ssub.s32 %s28, %s35
      %p37 = scmp.eq.s32.totalorder %s36, 0
      %s39 = sadd.s32 %s38, 1
      %s40 = scalar_select %p37, %s38, %s39
      %p43 = pneg %p37
      %p44 = scmp.eq.s32.totalorder %s28, 1
      %p45 = por %p43, %p44
      %p46 = scmp.ne.s32.totalorder %s38, %s41
      %p47 = scmp.eq.s32.totalorder %s28, 0
      %p48 = por %p46, %p47
      %p49 = scmp.ne.s32.totalorder %s38, %s41
      %p50 = scmp.eq.s32.totalorder %s33, 1
      %p51 = por %p49, %p50
      %p52 = scmp.ne.s32.totalorder %s41, %s42
      %p53 = scmp.eq.s32.totalorder %s33, 0
      %p54 = por %p52, %p53
      %p55 = scmp.ne.s32.totalorder %s41, %s42
      %p56 = scmp.eq.s32.totalorder %s34, 1
      %p57 = por %p55, %p56
      %p59 = scmp.ne.s32.totalorder %s42, %s58
      %p60 = scmp.eq.s32.totalorder %s34, 0
      %p61 = por %p59, %p60
      %s63 = sadd.s32 %s62, 1
      %p66 = scmp.eq.s32.totalorder %s28, 1
      %p67 = scmp.ne.s32.totalorder %s62, %s64
      %p68 = scmp.eq.s32.totalorder %s28, 0
      %p69 = por %p67, %p68
      %p70 = scmp.ne.s32.totalorder %s62, %s64
      %p71 = scmp.eq.s32.totalorder %s33, 1
      %p72 = por %p70, %p71
      %p73 = scmp.ne.s32.totalorder %s64, %s65
      %p74 = scmp.eq.s32.totalorder %s33, 0
      %p75 = por %p73, %p74
      %p76 = scmp.ne.s32.totalorder %s64, %s65
      %p77 = scmp.eq.s32.totalorder %s34, 1
      %p78 = por %p76, %p77
      %p80 = scmp.ne.s32.totalorder %s65, %s79
      %p81 = scmp.eq.s32.totalorder %s34, 0
      %p82 = por %p80, %p81
      %s84 = sadd.s32 %s83, 1
      %p87 = scmp.eq.s32.totalorder %s28, 1
      %p88 = scmp.ne.s32.totalorder %s83, %s85
      %p89 = scmp.eq.s32.totalorder %s28, 0
      %p90 = por %p88, %p89
      %p91 = scmp.ne.s32.totalorder %s83, %s85
      %p92 = scmp.eq.s32.totalorder %s33, 1
      %p93 = por %p91, %p92
      %p94 = scmp.ne.s32.totalorder %s85, %s86
      %p95 = scmp.eq.s32.totalorder %s33, 0
      %p96 = por %p94, %p95
      %p97 = scmp.ne.s32.totalorder %s85, %s86
      %p98 = scmp.eq.s32.totalorder %s34, 1
      %p99 = por %p97, %p98
      %p101 = scmp.ne.s32.totalorder %s86, %s100
      %p102 = scmp.eq.s32.totalorder %s34, 0
      %p103 = por %p101, %p102
      %s105 = sadd.s32 %s104, 1
      %p108 = scmp.eq.s32.totalorder %s28, 1
      %p109 = scmp.ne.s32.totalorder %s104, %s106
      %p110 = scmp.eq.s32.totalorder %s28, 0
      %p111 = por %p109, %p110
      %p112 = scmp.ne.s32.totalorder %s104, %s106
      %p113 = scmp.eq.s32.totalorder %s33, 1
      %p114 = por %p112, %p113
      %p115 = scmp.ne.s32.totalorder %s106, %s107
      %p116 = scmp.eq.s32.totalorder %s33, 0
      %p117 = por %p115, %p116
      %p118 = scmp.ne.s32.totalorder %s106, %s107
      %p119 = scmp.eq.s32.totalorder %s34, 1
      %p120 = por %p118, %p119
      %p122 = scmp.ne.s32.totalorder %s107, %s121
      %p123 = scmp.eq.s32.totalorder %s34, 0
      %p124 = por %p122, %p123
      %s126 = sadd.s32 %s125, 1
      %p129 = scmp.eq.s32.totalorder %s28, 1
      %p130 = scmp.ne.s32.totalorder %s125, %s127
      %p131 = scmp.eq.s32.totalorder %s28, 0
      %p132 = por %p130, %p131
      %p133 = scmp.ne.s32.totalorder %s125, %s127
      %p134 = scmp.eq.s32.totalorder %s33, 1
      %p135 = por %p133, %p134
      %p136 = scmp.ne.s32.totalorder %s127, %s128
      %p137 = scmp.eq.s32.totalorder %s33, 0
      %p138 = por %p136, %p137
      %p139 = scmp.ne.s32.totalorder %s127, %s128
      %p140 = scmp.eq.s32.totalorder %s34, 1
      %p141 = por %p139, %p140
      %p143 = scmp.ne.s32.totalorder %s128, %s142
      %p144 = scmp.eq.s32.totalorder %s34, 0
      %p145 = por %p143, %p144
      %s147 = sadd.s32 %s146, 1
      %p150 = scmp.eq.s32.totalorder %s28, 1
      %p151 = scmp.ne.s32.totalorder %s146, %s148
      %p152 = scmp.eq.s32.totalorder %s28, 0
      %p153 = por %p151, %p152
      %p154 = scmp.ne.s32.totalorder %s146, %s148
      %p155 = scmp.eq.s32.totalorder %s33, 1
      %p156 = por %p154, %p155
      %p157 = scmp.ne.s32.totalorder %s148, %s149
      %p158 = scmp.eq.s32.totalorder %s33, 0
      %p159 = por %p157, %p158
      %p160 = scmp.ne.s32.totalorder %s148, %s149
      %p161 = scmp.eq.s32.totalorder %s34, 1
      %p162 = por %p160, %p161
      %p164 = scmp.ne.s32.totalorder %s149, %s163
      %p165 = scmp.eq.s32.totalorder %s34, 0
      %p166 = por %p164, %p165
      %s168 = sadd.s32 %s167, 1
      %p171 = scmp.eq.s32.totalorder %s28, 1
      %p172 = scmp.ne.s32.totalorder %s167, %s169
      %p173 = scmp.eq.s32.totalorder %s28, 0
      %p174 = por %p172, %p173
      %p175 = scmp.ne.s32.totalorder %s167, %s169
      %p176 = scmp.eq.s32.totalorder %s33, 1
      %p177 = por %p175, %p176
      %p178 = scmp.ne.s32.totalorder %s169, %s170
      %p179 = scmp.eq.s32.totalorder %s33, 0
      %p180 = por %p178, %p179
      %p181 = scmp.ne.s32.totalorder %s169, %s170
      %p182 = scmp.eq.s32.totalorder %s34, 1
      %p183 = por %p181, %p182
      %p185 = scmp.ne.s32.totalorder %s170, %s184
      %p186 = scmp.eq.s32.totalorder %s34, 0
      %p187 = por %p185, %p186
      %s189 = sadd.s32 %s188, 1
      %p192 = scmp.eq.s32.totalorder %s28, 1
      %p193 = scmp.ne.s32.totalorder %s188, %s190
      %p194 = scmp.eq.s32.totalorder %s28, 0
      %p195 = por %p193, %p194
      %p196 = scmp.ne.s32.totalorder %s188, %s190
      %p197 = scmp.eq.s32.totalorder %s33, 1
      %p198 = por %p196, %p197
      %p199 = scmp.ne.s32.totalorder %s190, %s191
      %p200 = scmp.eq.s32.totalorder %s33, 0
      %p201 = por %p199, %p200
      %p202 = scmp.ne.s32.totalorder %s190, %s191
      %p203 = scmp.eq.s32.totalorder %s34, 1
      %p204 = por %p202, %p203
      %p206 = scmp.ne.s32.totalorder %s191, %s205
      %p207 = scmp.eq.s32.totalorder %s34, 0
      %p208 = por %p206, %p207
      %s210 = sadd.s32 %s209, 1
      %p213 = scmp.eq.s32.totalorder %s28, 1
      %p214 = scmp.ne.s32.totalorder %s209, %s211
      %p215 = scmp.eq.s32.totalorder %s28, 0
      %p216 = por %p214, %p215
      %p217 = scmp.ne.s32.totalorder %s209, %s211
      %p218 = scmp.eq.s32.totalorder %s33, 1
      %p219 = por %p217, %p218
      %p220 = scmp.ne.s32.totalorder %s211, %s212
      %p221 = scmp.eq.s32.totalorder %s33, 0
      %p222 = por %p220, %p221
      %p223 = scmp.ne.s32.totalorder %s211, %s212
      %p224 = scmp.eq.s32.totalorder %s34, 1
      %p225 = por %p223, %p224
      %p227 = scmp.ne.s32.totalorder %s212, %s226
      %p228 = scmp.eq.s32.totalorder %s34, 0
      %p229 = por %p227, %p228
      %s231 = sadd.s32 %s230, 1
      %p234 = scmp.eq.s32.totalorder %s28, 1
      %p235 = scmp.ne.s32.totalorder %s230, %s232
      %p236 = scmp.eq.s32.totalorder %s28, 0
      %p237 = por %p235, %p236
      %p238 = scmp.ne.s32.totalorder %s230, %s232
      %p239 = scmp.eq.s32.totalorder %s33, 1
      %p240 = por %p238, %p239
      %p241 = scmp.ne.s32.totalorder %s232, %s233
      %p242 = scmp.eq.s32.totalorder %s33, 0
      %p243 = por %p241, %p242
      %p244 = scmp.ne.s32.totalorder %s232, %s233
      %p245 = scmp.eq.s32.totalorder %s34, 1
      %p246 = por %p244, %p245
      %p248 = scmp.ne.s32.totalorder %s233, %s247
      %p249 = scmp.eq.s32.totalorder %s34, 0
      %p250 = por %p248, %p249
      %s252 = sadd.s32 %s251, 1
      %p255 = scmp.eq.s32.totalorder %s28, 1
      %p256 = scmp.ne.s32.totalorder %s251, %s253
      %p257 = scmp.eq.s32.totalorder %s28, 0
      %p258 = por %p256, %p257
      %p259 = scmp.ne.s32.totalorder %s251, %s253
      %p260 = scmp.eq.s32.totalorder %s33, 1
      %p261 = por %p259, %p260
      %p262 = scmp.ne.s32.totalorder %s253, %s254
      %p263 = scmp.eq.s32.totalorder %s33, 0
      %p264 = por %p262, %p263
      %p265 = scmp.ne.s32.totalorder %s253, %s254
      %p266 = scmp.eq.s32.totalorder %s34, 1
      %p267 = por %p265, %p266
      %p269 = scmp.ne.s32.totalorder %s254, %s268
      %p270 = scmp.eq.s32.totalorder %s34, 0
      %p271 = por %p269, %p270
      %s272 = ssub.s32 %s28, %s35
      %p273 = scmp.eq.s32.totalorder %s272, 0
      %s275 = sadd.s32 %s274, 1
      %s276 = scalar_select %p273, %s274, %s275
      %p279 = pneg %p273
      %p280 = scmp.eq.s32.totalorder %s28, 1
      %p281 = por %p279, %p280
      %p282 = scmp.ne.s32.totalorder %s274, %s277
      %p283 = scmp.eq.s32.totalorder %s28, 0
      %p284 = por %p282, %p283
      %p285 = scmp.ne.s32.totalorder %s274, %s277
      %p286 = scmp.eq.s32.totalorder %s33, 1
      %p287 = por %p285, %p286
      %p288 = scmp.ne.s32.totalorder %s277, %s278
      %p289 = scmp.eq.s32.totalorder %s33, 0
      %p290 = por %p288, %p289
      %p291 = scmp.ne.s32.totalorder %s277, %s278
      %p292 = scmp.eq.s32.totalorder %s34, 1
      %p293 = por %p291, %p292
      %p295 = scmp.ne.s32.totalorder %s278, %s294
      %p296 = scmp.eq.s32.totalorder %s34, 0
      %p297 = por %p295, %p296
      %p298 = scmp.le.s32.totalorder 1, %s28
      %p299 = scmp.lt.s32.totalorder %s28, 3
      %p300 = pnand %p298, %p299
      %p301 = pneg %p300
      // Predicated region
      $region9: #{encoder_block_pallas.1} parent=5 // pred_check
        _
      $region10: #{encoder_block_pallas.1} parent=5 // pred_check_branch
        %303 = sbr.rel (%p300) target = $region12
      $region11: #{encoder_block_pallas.1} parent=5 // pred_region
        %s304 = ssub.s32 %s28, 1
        // Predicated region
        $region13: #{encoder_block_pallas.1} parent=11 // pred_check
          %p305 = pneg %p75
        $region14: #{encoder_block_pallas.1} parent=11 // pred_check_branch
          %307 = sbr.rel (%p305) target = $region16
        $region15: #{encoder_block_pallas.1} parent=11 // pred_region
          _
        $region16: #{encoder_block_pallas.1} parent=11 // pred_fallthru
          _
        // Predicated region
        $region17: #{encoder_block_pallas.1} parent=11 // pred_check
          %p308 = pneg %p96
        $region18: #{encoder_block_pallas.1} parent=11 // pred_check_branch
          %310 = sbr.rel (%p308) target = $region20
        $region19: #{encoder_block_pallas.1} parent=11 // pred_region
          _
        $region20: #{encoder_block_pallas.1} parent=11 // pred_fallthru
          _
        // Predicated region
        $region21: #{encoder_block_pallas.1} parent=11 // pred_check
          %p311 = pneg %p117
        $region22: #{encoder_block_pallas.1} parent=11 // pred_check_branch
          %313 = sbr.rel (%p311) target = $region24
        $region23: #{encoder_block_pallas.1} parent=11 // pred_region
          %s315 = ssub.s32 256, 256
          %316 = vsyncadd [#allocation5], %s315
          %s317 = sshll.u32 [#allocation4], 4
          %s318 = int_to_ptr.vmem [resolvable:$true] %s317
          %323 = dma.hbm_to_vmem [thread:$0]  %s4, 256, %s318, [#allocation5], 64, 64, 4
        $region24: #{encoder_block_pallas.1} parent=11 // pred_fallthru
          _
        // Predicated region
        $region25: #{encoder_block_pallas.1} parent=11 // pred_check
          %p324 = pneg %p138
        $region26: #{encoder_block_pallas.1} parent=11 // pred_check_branch
          %326 = sbr.rel (%p324) target = $region28
        $region27: #{encoder_block_pallas.1} parent=11 // pred_region
          _
        $region28: #{encoder_block_pallas.1} parent=11 // pred_fallthru
          _
        // Predicated region
        $region29: #{encoder_block_pallas.1} parent=11 // pred_check
          %p327 = pneg %p159
        $region30: #{encoder_block_pallas.1} parent=11 // pred_check_branch
          %329 = sbr.rel (%p327) target = $region32
        $region31: #{encoder_block_pallas.1} parent=11 // pred_region
          _
        $region32: #{encoder_block_pallas.1} parent=11 // pred_fallthru
          _
        // Predicated region
        $region33: #{encoder_block_pallas.1} parent=11 // pred_check
          %p330 = pneg %p180
        $region34: #{encoder_block_pallas.1} parent=11 // pred_check_branch
          %332 = sbr.rel (%p330) target = $region36
        $region35: #{encoder_block_pallas.1} parent=11 // pred_region
          _
        $region36: #{encoder_block_pallas.1} parent=11 // pred_fallthru
          _
        // Predicated region
        $region37: #{encoder_block_pallas.1} parent=11 // pred_check
          %p333 = pneg %p201
        $region38: #{encoder_block_pallas.1} parent=11 // pred_check_branch
          %335 = sbr.rel (%p333) target = $region40
        $region39: #{encoder_block_pallas.1} parent=11 // pred_region
          _
        $region40: #{encoder_block_pallas.1} parent=11 // pred_fallthru
          _
        // Predicated region
        $region41: #{encoder_block_pallas.1} parent=11 // pred_check
          %p336 = pneg %p222
        $region42: #{encoder_block_pallas.1} parent=11 // pred_check_branch
          %338 = sbr.rel (%p336) target = $region44
        $region43: #{encoder_block_pallas.1} parent=11 // pred_region
          _
        $region44: #{encoder_block_pallas.1} parent=11 // pred_fallthru
          _
        // Predicated region
        $region45: #{encoder_block_pallas.1} parent=11 // pred_check
          %p339 = pneg %p243
        $region46: #{encoder_block_pallas.1} parent=11 // pred_check_branch
          %341 = sbr.rel (%p339) target = $region48
        $region47: #{encoder_block_pallas.1} parent=11 // pred_region
          _
        $region48: #{encoder_block_pallas.1} parent=11 // pred_fallthru
          _
        // Predicated region
        $region49: #{encoder_block_pallas.1} parent=11 // pred_check
          %p342 = pneg %p264
        $region50: #{encoder_block_pallas.1} parent=11 // pred_check_branch
          %344 = sbr.rel (%p342) target = $region52
        $region51: #{encoder_block_pallas.1} parent=11 // pred_region
          _
        $region52: #{encoder_block_pallas.1} parent=11 // pred_fallthru
          _
      $region12: #{encoder_block_pallas.1} parent=5 // pred_fallthru
        _
      %p345 = scmp.lt.s32.totalorder %s28, 2
      // Predicated region
      $region53: #{encoder_block_pallas.1} parent=5 // pred_check
        %p346 = pneg %p345
      $region54: #{encoder_block_pallas.1} parent=5 // pred_check_branch
        %348 = sbr.rel (%p346) target = $region56
      $region55: #{encoder_block_pallas.1} parent=5 // pred_region
        // Predicated region
        $region57: #{encoder_block_pallas.1} parent=55 // pred_check
          %p349 = pneg %p48
        $region58: #{encoder_block_pallas.1} parent=55 // pred_check_branch
          %351 = sbr.rel (%p349) target = $region60
        $region59: #{encoder_block_pallas.1} parent=55 // pred_region
          %p352 = scmp.lt.s32.totalorder %s28, 1
          %s353 = scalar_select %p352, %s28, 1
          %s354 = smul.addr %s353, 8
          %s355 = scalar_lea.vmem %s1, %s354
        $region60: #{encoder_block_pallas.1} parent=55 // pred_fallthru
          _
      $region56: #{encoder_block_pallas.1} parent=5 // pred_fallthru
        _
      %p356 = scmp.le.s32.totalorder 1, %s28
      %p357 = scmp.lt.s32.totalorder %s28, 3
      %p358 = pnand %p356, %p357
      %p359 = pneg %p358
      // Predicated region
      $region61: #{encoder_block_pallas.1} parent=5 // pred_check
        _
      $region62: #{encoder_block_pallas.1} parent=5 // pred_check_branch
        %361 = sbr.rel (%p358) target = $region64
      $region63: #{encoder_block_pallas.1} parent=5 // pred_region
        %s362 = ssub.s32 %s28, 1
        // Predicated region
        $region65: #{encoder_block_pallas.1} parent=63 // pred_check
          %p363 = pneg %p117
        $region66: #{encoder_block_pallas.1} parent=63 // pred_check_branch
          %365 = sbr.rel (%p363) target = $region68
        $region67: #{encoder_block_pallas.1} parent=63 // pred_region
          %366 = dma.done [#allocation5], 256
        $region68: #{encoder_block_pallas.1} parent=63 // pred_fallthru
          _
        %p367 = scmp.lt.s32.totalorder %s33, 1
        %s368 = scalar_select %p367, %s33, 1
        %s369 = smul.addr %s368, 8
        %s370 = scalar_lea.vmem %s1, %s369
        %p371 = pneg %p54
        %p372 = pneg %p51
        %p373 = pneg %p75
        %p374 = pneg %p72
        %p375 = pneg %p96
        %p376 = pneg %p93
        %p377 = pneg %p117
        %p378 = pneg %p114
        %p379 = pneg %p138
        %p380 = pneg %p135
        %p381 = pneg %p159
        %p382 = pneg %p156
        %p383 = pneg %p180
        %p384 = pneg %p177
        %p385 = pneg %p201
        %p386 = pneg %p198
        %p387 = pneg %p222
        %p388 = pneg %p219
        %p389 = pneg %p243
        %p390 = pneg %p240
        %p391 = pneg %p264
        %p392 = pneg %p261
        %p393 = pneg %p290
        %p394 = pneg %p287
        %s395 = sand.u32 %s277, 1
        %s396 = scalar_lea.sflag [#allocation6], %s395
        %s397 = sand.u32 %s277, 1
        %s398 = smul.addr %s397, 8
        %s399 = scalar_lea.vmem [#allocation7], %s398
        %p400 = scmp.lt.s32.totalorder %s33, 1
        %s401 = scalar_select %p400, %s33, 1
        %s402 = smul.addr %s401, 8
        %s403 = scalar_lea.vmem %s1, %s402
        %v405 = vld [vmem:[%s403] sm:$0xff]
        %v406 = vpack.c.bf16 %v405, %v405
        %v407 = vld [vmem:[%s2] sm:$0xf]
        %v408 = vld [vmem:[%s2 + $0x4] sm:$0xf]
        %v409 = vld [vmem:[%s2 + $0x8] sm:$0xf]
        %v410 = vld [vmem:[%s2 + $0xc] sm:$0xf]
        %v415 = vunpack.c.l.b16 %v407
        %v416 = vunpack.c.l.b16 %v408
        %v417 = vunpack.c.l.b16 %v409
        %v418 = vunpack.c.l.b16 %v410
        %v419 = vpack.c.b16 %v416, %v415
        %v420 = vpack.c.b16 %v418, %v417
        %vm423 = vcmask 261120
        %v425 = vsel %vm423, %v406, 0
        %427 = vmatprep.subr.bf16.mxu0 0
        %428 = vmatpush1.bf16.msra.mxu0 %v419
        %429 = vmatprep.subr.bf16.mxu0 0
        %430 = vmatpush1.bf16.msra.mxu0 %v420
        %431 = vmatprep.subr.bf16.mxu0 0
        %432 = vmatpush1.bf16.msra.mxu0 0
        %433 = vmatprep.subr.bf16.mxu0 0
        %434 = vmatpush1.bf16.msra.mxu0 0
        %435 = vmatprep.subr.bf16.mxu0 0
        %436 = vmatpush1.bf16.msra.mxu0 0
        %437 = vmatprep.subr.bf16.mxu0 0
        %438 = vmatpush1.bf16.msra.mxu0 0
        %439 = vmatprep.subr.bf16.mxu0 0
        %440 = vmatpush1.bf16.msra.mxu0 0
        %441 = vmatprep.subr.bf16.mxu0 0
        %442 = vmatpush1.bf16.msra.mxu0 0
        %443 = vmatprep.subr.bf16.mxu0 0
        %444 = vmatpush1.bf16.msra.mxu0 0
        %445 = vmatprep.subr.bf16.mxu0 0
        %446 = vmatpush1.bf16.msra.mxu0 0
        %447 = vmatprep.subr.bf16.mxu0 0
        %448 = vmatpush1.bf16.msra.mxu0 0
        %449 = vmatprep.subr.bf16.mxu0 0
        %450 = vmatpush1.bf16.msra.mxu0 0
        %451 = vmatprep.subr.bf16.mxu0 0
        %452 = vmatpush1.bf16.msra.mxu0 0
        %453 = vmatprep.subr.bf16.mxu0 0
        %454 = vmatpush1.bf16.msra.mxu0 0
        %455 = vmatprep.subr.bf16.mxu0 0
        %456 = vmatpush1.bf16.msra.mxu0 0
        %457 = vmatprep.subr.bf16.mxu0 0
        %458 = vmatpush1.bf16.msra.mxu0 0
        %459 = vmatprep.mubr.bf16.mxu0 0
        %460 = vmatmul.mubr.bf16.gmra.mrb[0].mxu0 %v425
        %v461 = vpop.f32.mrb[0].mxu0
        %v462 = vadd.f32 0.0, %v461
        %v463 = vpop.f32.mrb[0].mxu0
        %v464 = vpop.f32.mrb[0].mxu0
        %v465 = vpop.f32.mrb[0].mxu0
        %466 = vdwg.mxu0
        %v467 = vpack.c.bf16 %v462, %v462
        %v468 = vlaneseq
        %v469 = vand.u32 %v468, 127
        %471 = vrot.lane.b32.xlu0 %v467, 120
        %v472 = vpop.permute.xlu0 %471
        %473 = vrot.lane.b32.xlu0 %v467, 112
        %v474 = vpop.permute.xlu0 %473
        %475 = vrot.lane.b32.xlu0 %v467, 104
        %v476 = vpop.permute.xlu0 %475
        %477 = vrot.lane.b32.xlu0 %v467, 96
        %v478 = vpop.permute.xlu0 %477
        %vm479 = vcmask 64512
        %v481 = vsel %vm479, %v467, 0
        %v484 = vsel %vm479, %v478, 0
        %486 = vmatprep.subr.bf16.mxu0 0
        %487 = vmatpush1.bf16.xpose.msra.mxu0 %v484
        %488 = vmatprep.subr.bf16.mxu0 0
        %489 = vmatpush1.bf16.xpose.msra.mxu0 0
        %490 = vmatprep.subr.bf16.mxu0 0
        %491 = vmatpush1.bf16.xpose.msra.mxu0 0
        %492 = vmatprep.subr.bf16.mxu0 0
        %493 = vmatpush1.bf16.xpose.msra.mxu0 0
        %494 = vmatprep.subr.bf16.mxu0 0
        %495 = vmatpush1.bf16.xpose.msra.mxu0 0
        %496 = vmatprep.subr.bf16.mxu0 0
        %497 = vmatpush1.bf16.xpose.msra.mxu0 0
        %498 = vmatprep.subr.bf16.mxu0 0
        %499 = vmatpush1.bf16.xpose.msra.mxu0 0
        %500 = vmatprep.subr.bf16.mxu0 0
        %501 = vmatpush1.bf16.xpose.msra.mxu0 0
        %502 = vmatprep.subr.bf16.mxu0 0
        %503 = vmatpush1.bf16.xpose.msra.mxu0 0
        %504 = vmatprep.subr.bf16.mxu0 0
        %505 = vmatpush1.bf16.xpose.msra.mxu0 0
        %506 = vmatprep.subr.bf16.mxu0 0
        %507 = vmatpush1.bf16.xpose.msra.mxu0 0
        %508 = vmatprep.subr.bf16.mxu0 0
        %509 = vmatpush1.bf16.xpose.msra.mxu0 0
        %510 = vmatprep.subr.bf16.mxu0 0
        %511 = vmatpush1.bf16.xpose.msra.mxu0 0
        %512 = vmatprep.subr.bf16.mxu0 0
        %513 = vmatpush1.bf16.xpose.msra.mxu0 0
        %514 = vmatprep.subr.bf16.mxu0 0
        %515 = vmatpush1.bf16.xpose.msra.mxu0 0
        %516 = vmatprep.subr.bf16.mxu0 0
        %517 = vmatpush1.bf16.xpose.msra.mxu0 0
        %518 = vmatprep.mubr.bf16.mxu0 0
        %519 = vmatmul.mubr.bf16.gmra.mrb[0].mxu0 %v481
        %v520 = vpop.f32.mrb[0].mxu0
        %v521 = vadd.f32 0.0, %v520
        %v522 = vpop.f32.mrb[0].mxu0
        %v523 = vpop.f32.mrb[0].mxu0
        %v524 = vpop.f32.mrb[0].mxu0
        %525 = vdwg.mxu0
        %526 = vrot.lane.b32.xlu0 %v472, 96
        %v527 = vpop.permute.xlu0 %526
        %v529 = vsel %vm479, %v472, 0
        %v532 = vsel %vm479, %v527, 0
        %534 = vmatprep.subr.bf16.mxu0 0
        %535 = vmatpush1.bf16.xpose.msra.mxu0 %v532
        %536 = vmatprep.subr.bf16.mxu0 0
        %537 = vmatpush1.bf16.xpose.msra.mxu0 0
        %538 = vmatprep.subr.bf16.mxu0 0
        %539 = vmatpush1.bf16.xpose.msra.mxu0 0
        %540 = vmatprep.subr.bf16.mxu0 0
        %541 = vmatpush1.bf16.xpose.msra.mxu0 0
        %542 = vmatprep.subr.bf16.mxu0 0
        %543 = vmatpush1.bf16.xpose.msra.mxu0 0
        %544 = vmatprep.subr.bf16.mxu0 0
        %545 = vmatpush1.bf16.xpose.msra.mxu0 0
        %546 = vmatprep.subr.bf16.mxu0 0
        %547 = vmatpush1.bf16.xpose.msra.mxu0 0
        %548 = vmatprep.subr.bf16.mxu0 0
        %549 = vmatpush1.bf16.xpose.msra.mxu0 0
        %550 = vmatprep.subr.bf16.mxu0 0
        %551 = vmatpush1.bf16.xpose.msra.mxu0 0
        %552 = vmatprep.subr.bf16.mxu0 0
        %553 = vmatpush1.bf16.xpose.msra.mxu0 0
        %554 = vmatprep.subr.bf16.mxu0 0
        %555 = vmatpush1.bf16.xpose.msra.mxu0 0
        %556 = vmatprep.subr.bf16.mxu0 0
        %557 = vmatpush1.bf16.xpose.msra.mxu0 0
        %558 = vmatprep.subr.bf16.mxu0 0
        %559 = vmatpush1.bf16.xpose.msra.mxu0 0
        %560 = vmatprep.subr.bf16.mxu0 0
        %561 = vmatpush1.bf16.xpose.msra.mxu0 0
        %562 = vmatprep.subr.bf16.mxu0 0
        %563 = vmatpush1.bf16.xpose.msra.mxu0 0
        %564 = vmatprep.subr.bf16.mxu0 0
        %565 = vmatpush1.bf16.xpose.msra.mxu0 0
        %566 = vmatprep.mubr.bf16.mxu0 0
        %567 = vmatmul.mubr.bf16.gmra.mrb[0].mxu0 %v529
        %v568 = vpop.f32.mrb[0].mxu0
        %v569 = vadd.f32 0.0, %v568
        %v570 = vpop.f32.mrb[0].mxu0
        %v571 = vpop.f32.mrb[0].mxu0
        %v572 = vpop.f32.mrb[0].mxu0
        %573 = vdwg.mxu0
        %574 = vrot.lane.b32.xlu0 %v474, 96
        %v575 = vpop.permute.xlu0 %574
        %v577 = vsel %vm479, %v474, 0
        %v580 = vsel %vm479, %v575, 0
        %582 = vmatprep.subr.bf16.mxu0 0
        %583 = vmatpush1.bf16.xpose.msra.mxu0 %v580
        %584 = vmatprep.subr.bf16.mxu0 0
        %585 = vmatpush1.bf16.xpose.msra.mxu0 0
        %586 = vmatprep.subr.bf16.mxu0 0
        %587 = vmatpush1.bf16.xpose.msra.mxu0 0
        %588 = vmatprep.subr.bf16.mxu0 0
        %589 = vmatpush1.bf16.xpose.msra.mxu0 0
        %590 = vmatprep.subr.bf16.mxu0 0
        %591 = vmatpush1.bf16.xpose.msra.mxu0 0
        %592 = vmatprep.subr.bf16.mxu0 0
        %593 = vmatpush1.bf16.xpose.msra.mxu0 0
        %594 = vmatprep.subr.bf16.mxu0 0
        %595 = vmatpush1.bf16.xpose.msra.mxu0 0
        %596 = vmatprep.subr.bf16.mxu0 0
        %597 = vmatpush1.bf16.xpose.msra.mxu0 0
        %598 = vmatprep.subr.bf16.mxu0 0
        %599 = vmatpush1.bf16.xpose.msra.mxu0 0
        %600 = vmatprep.subr.bf16.mxu0 0
        %601 = vmatpush1.bf16.xpose.msra.mxu0 0
        %602 = vmatprep.subr.bf16.mxu0 0
        %603 = vmatpush1.bf16.xpose.msra.mxu0 0
        %604 = vmatprep.subr.bf16.mxu0 0
        %605 = vmatpush1.bf16.xpose.msra.mxu0 0
        %606 = vmatprep.subr.bf16.mxu0 0
        %607 = vmatpush1.bf16.xpose.msra.mxu0 0
        %608 = vmatprep.subr.bf16.mxu0 0
        %609 = vmatpush1.bf16.xpose.msra.mxu0 0
        %610 = vmatprep.subr.bf16.mxu0 0
        %611 = vmatpush1.bf16.xpose.msra.mxu0 0
        %612 = vmatprep.subr.bf16.mxu0 0
        %613 = vmatpush1.bf16.xpose.msra.mxu0 0
        %614 = vmatprep.mubr.bf16.mxu0 0
        %615 = vmatmul.mubr.bf16.gmra.mrb[0].mxu0 %v577
        %v616 = vpop.f32.mrb[0].mxu0
        %v617 = vadd.f32 0.0, %v616
        %v618 = vpop.f32.mrb[0].mxu0
        %v619 = vpop.f32.mrb[0].mxu0
        %v620 = vpop.f32.mrb[0].mxu0
        %621 = vdwg.mxu0
        %622 = vrot.lane.b32.xlu0 %v476, 96
        %v623 = vpop.permute.xlu0 %622
        %v625 = vsel %vm479, %v476, 0
        %v628 = vsel %vm479, %v623, 0
        %630 = vmatprep.subr.bf16.mxu0 0
        %631 = vmatpush1.bf16.xpose.msra.mxu0 %v628
        %632 = vmatprep.subr.bf16.mxu0 0
        %633 = vmatpush1.bf16.xpose.msra.mxu0 0
        %634 = vmatprep.subr.bf16.mxu0 0
        %635 = vmatpush1.bf16.xpose.msra.mxu0 0
        %636 = vmatprep.subr.bf16.mxu0 0
        %637 = vmatpush1.bf16.xpose.msra.mxu0 0
        %638 = vmatprep.subr.bf16.mxu0 0
        %639 = vmatpush1.bf16.xpose.msra.mxu0 0
        %640 = vmatprep.subr.bf16.mxu0 0
        %641 = vmatpush1.bf16.xpose.msra.mxu0 0
        %642 = vmatprep.subr.bf16.mxu0 0
        %643 = vmatpush1.bf16.xpose.msra.mxu0 0
        %644 = vmatprep.subr.bf16.mxu0 0
        %645 = vmatpush1.bf16.xpose.msra.mxu0 0
        %646 = vmatprep.subr.bf16.mxu0 0
        %647 = vmatpush1.bf16.xpose.msra.mxu0 0
        %648 = vmatprep.subr.bf16.mxu0 0
        %649 = vmatpush1.bf16.xpose.msra.mxu0 0
        %650 = vmatprep.subr.bf16.mxu0 0
        %651 = vmatpush1.bf16.xpose.msra.mxu0 0
        %652 = vmatprep.subr.bf16.mxu0 0
        %653 = vmatpush1.bf16.xpose.msra.mxu0 0
        %654 = vmatprep.subr.bf16.mxu0 0
        %655 = vmatpush1.bf16.xpose.msra.mxu0 0
        %656 = vmatprep.subr.bf16.mxu0 0
        %657 = vmatpush1.bf16.xpose.msra.mxu0 0
        %658 = vmatprep.subr.bf16.mxu0 0
        %659 = vmatpush1.bf16.xpose.msra.mxu0 0
        %660 = vmatprep.subr.bf16.mxu0 0
        %661 = vmatpush1.bf16.xpose.msra.mxu0 0
        %662 = vmatprep.mubr.bf16.mxu0 0
        %663 = vmatmul.mubr.bf16.gmra.mrb[0].mxu0 %v625
        %v664 = vpop.f32.mrb[0].mxu0
        %v665 = vadd.f32 0.0, %v664
        %v666 = vpop.f32.mrb[0].mxu0
        %v667 = vpop.f32.mrb[0].mxu0
        %v668 = vpop.f32.mrb[0].mxu0
        %669 = vdwg.mxu0
        %v670 = vmul.f32 %v521, 0.35355338
        %v671 = vmul.f32 %v569, 0.35355338
        %v672 = vmul.f32 %v617, 0.35355338
        %v673 = vmul.f32 %v665, 0.35355338
        %s674 = sld [smem:[#allocation3 + %s33]]
        %v675 = vstv %s674
        %vm676 = vcmp.lt.s32.totalorder %v469, %v675
        %v677 = vsel %vm676, 1, 0
        %vm678 = vcmp.eq.s32.totalorder %v677, 1
        %v679 = vsel %vm678, %v670, -1000000.0
        %v680 = vsel %vm678, %v671, -1000000.0
        %v681 = vsel %vm678, %v672, -1000000.0
        %v682 = vsel %vm678, %v673, -1000000.0
        %v683 = vsel %vm479, %v679, -inf
        %684 = vmax.xlane.f32.xlu0 %v683
        %v685 = vpop.xlane.xlu0 %684
        %v686 = vsel %vm479, %v680, -inf
        %687 = vmax.xlane.f32.xlu0 %v686
        %v688 = vpop.xlane.xlu0 %687
        %v689 = vsel %vm479, %v681, -inf
        %690 = vmax.xlane.f32.xlu0 %v689
        %v691 = vpop.xlane.xlu0 %690
        %v692 = vsel %vm479, %v682, -inf
        %693 = vmax.xlane.f32.xlu0 %v692
        %v694 = vpop.xlane.xlu0 %693
        %v695 = vsub.f32 %v679, %v685
        %v696 = vsub.f32 %v680, %v688
        %v697 = vsub.f32 %v681, %v691
        %v698 = vsub.f32 %v682, %v694
        %v699 = vmul.f32 %v695, 1.442695
        %v700 = vpow.pop %v699
        %v701 = vmul.f32 %v696, 1.442695
        %v702 = vpow.pop %v701
        %v703 = vmul.f32 %v697, 1.442695
        %v704 = vpow.pop %v703
        %v705 = vmul.f32 %v698, 1.442695
        %v706 = vpow.pop %v705
        %v707 = vsel %vm479, %v700, 0.0
        %708 = vadd.xlane.f32.xlu0 %v707
        %v709 = vpop.xlane.xlu0 %708
        %v710 = vsel %vm479, %v702, 0.0
        %711 = vadd.xlane.f32.xlu0 %v710
        %v712 = vpop.xlane.xlu0 %711
        %v713 = vsel %vm479, %v704, 0.0
        %714 = vadd.xlane.f32.xlu0 %v713
        %v715 = vpop.xlane.xlu0 %714
        %v716 = vsel %vm479, %v706, 0.0
        %717 = vadd.xlane.f32.xlu0 %v716
        %v718 = vpop.xlane.xlu0 %717
        %v719 = vrcp.pop %v709
        %v720 = vrcp.pop %v712
        %v721 = vrcp.pop %v715
        %v722 = vrcp.pop %v718
        %v723 = vmul.f32 %v700, %v719
        %v724 = vmul.f32 %v702, %v720
        %v725 = vmul.f32 %v704, %v721
        %v726 = vmul.f32 %v706, %v722
        %v727 = vpack.c.bf16 %v723, %v723
        %v728 = vpack.c.bf16 %v724, %v724
        %v729 = vpack.c.bf16 %v725, %v725
        %v730 = vpack.c.bf16 %v726, %v726
        %731 = vrot.lane.b32.xlu0 %v467, 64
        %v732 = vpop.permute.xlu0 %731
        %v734 = vsel %vm479, %v727, 0
        %vm736 = vcmask 1043456
        %v738 = vsel %vm736, %v732, 0
        %740 = vmatprep.subr.bf16.mxu0 0
        %741 = vmatpush1.bf16.msra.mxu0 %v738
        %742 = vmatprep.subr.bf16.mxu0 0
        %743 = vmatpush1.bf16.msra.mxu0 0
        %744 = vmatprep.subr.bf16.mxu0 0
        %745 = vmatpush1.bf16.msra.mxu0 0
        %746 = vmatprep.subr.bf16.mxu0 0
        %747 = vmatpush1.bf16.msra.mxu0 0
        %748 = vmatprep.subr.bf16.mxu0 0
        %749 = vmatpush1.bf16.msra.mxu0 0
        %750 = vmatprep.subr.bf16.mxu0 0
        %751 = vmatpush1.bf16.msra.mxu0 0
        %752 = vmatprep.subr.bf16.mxu0 0
        %753 = vmatpush1.bf16.msra.mxu0 0
        %754 = vmatprep.subr.bf16.mxu0 0
        %755 = vmatpush1.bf16.msra.mxu0 0
        %756 = vmatprep.subr.bf16.mxu0 0
        %757 = vmatpush1.bf16.msra.mxu0 0
        %758 = vmatprep.subr.bf16.mxu0 0
        %759 = vmatpush1.bf16.msra.mxu0 0
        %760 = vmatprep.subr.bf16.mxu0 0
        %761 = vmatpush1.bf16.msra.mxu0 0
        %762 = vmatprep.subr.bf16.mxu0 0
        %763 = vmatpush1.bf16.msra.mxu0 0
        %764 = vmatprep.subr.bf16.mxu0 0
        %765 = vmatpush1.bf16.msra.mxu0 0
        %766 = vmatprep.subr.bf16.mxu0 0
        %767 = vmatpush1.bf16.msra.mxu0 0
        %768 = vmatprep.subr.bf16.mxu0 0
        %769 = vmatpush1.bf16.msra.mxu0 0
        %770 = vmatprep.subr.bf16.mxu0 0
        %771 = vmatpush1.bf16.msra.mxu0 0
        %772 = vmatprep.mubr.bf16.mxu0 0
        %773 = vmatmul.mubr.bf16.gmra.mrb[0].mxu0 %v734
        %v774 = vpop.f32.mrb[0].mxu0
        %v775 = vadd.f32 0.0, %v774
        %v776 = vpop.f32.mrb[0].mxu0
        %v777 = vpop.f32.mrb[0].mxu0
        %v778 = vpop.f32.mrb[0].mxu0
        %779 = vdwg.mxu0
        %780 = vrot.lane.b32.xlu0 %v472, 64
        %v781 = vpop.permute.xlu0 %780
        %v783 = vsel %vm479, %v728, 0
        %v786 = vsel %vm736, %v781, 0
        %788 = vmatprep.subr.bf16.mxu0 0
        %789 = vmatpush1.bf16.msra.mxu0 %v786
        %790 = vmatprep.subr.bf16.mxu0 0
        %791 = vmatpush1.bf16.msra.mxu0 0
        %792 = vmatprep.subr.bf16.mxu0 0
        %793 = vmatpush1.bf16.msra.mxu0 0
        %794 = vmatprep.subr.bf16.mxu0 0
        %795 = vmatpush1.bf16.msra.mxu0 0
        %796 = vmatprep.subr.bf16.mxu0 0
        %797 = vmatpush1.bf16.msra.mxu0 0
        %798 = vmatprep.subr.bf16.mxu0 0
        %799 = vmatpush1.bf16.msra.mxu0 0
        %800 = vmatprep.subr.bf16.mxu0 0
        %801 = vmatpush1.bf16.msra.mxu0 0
        %802 = vmatprep.subr.bf16.mxu0 0
        %803 = vmatpush1.bf16.msra.mxu0 0
        %804 = vmatprep.subr.bf16.mxu0 0
        %805 = vmatpush1.bf16.msra.mxu0 0
        %806 = vmatprep.subr.bf16.mxu0 0
        %807 = vmatpush1.bf16.msra.mxu0 0
        %808 = vmatprep.subr.bf16.mxu0 0
        %809 = vmatpush1.bf16.msra.mxu0 0
        %810 = vmatprep.subr.bf16.mxu0 0
        %811 = vmatpush1.bf16.msra.mxu0 0
        %812 = vmatprep.subr.bf16.mxu0 0
        %813 = vmatpush1.bf16.msra.mxu0 0
        %814 = vmatprep.subr.bf16.mxu0 0
        %815 = vmatpush1.bf16.msra.mxu0 0
        %816 = vmatprep.subr.bf16.mxu0 0
        %817 = vmatpush1.bf16.msra.mxu0 0
        %818 = vmatprep.subr.bf16.mxu0 0
        %819 = vmatpush1.bf16.msra.mxu0 0
        %820 = vmatprep.mubr.bf16.mxu0 0
        %821 = vmatmul.mubr.bf16.gmra.mrb[0].mxu0 %v783
        %v822 = vpop.f32.mrb[0].mxu0
        %v823 = vadd.f32 0.0, %v822
        %v824 = vpop.f32.mrb[0].mxu0
        %v825 = vpop.f32.mrb[0].mxu0
        %v826 = vpop.f32.mrb[0].mxu0
        %827 = vdwg.mxu0
        %828 = vrot.lane.b32.xlu0 %v474, 64
        %v829 = vpop.permute.xlu0 %828
        %v831 = vsel %vm479, %v729, 0
        %v834 = vsel %vm736, %v829, 0
        %836 = vmatprep.subr.bf16.mxu0 0
        %837 = vmatpush1.bf16.msra.mxu0 %v834
        %838 = vmatprep.subr.bf16.mxu0 0
        %839 = vmatpush1.bf16.msra.mxu0 0
        %840 = vmatprep.subr.bf16.mxu0 0
        %841 = vmatpush1.bf16.msra.mxu0 0
        %842 = vmatprep.subr.bf16.mxu0 0
        %843 = vmatpush1.bf16.msra.mxu0 0
        %844 = vmatprep.subr.bf16.mxu0 0
        %845 = vmatpush1.bf16.msra.mxu0 0
        %846 = vmatprep.subr.bf16.mxu0 0
        %847 = vmatpush1.bf16.msra.mxu0 0
        %848 = vmatprep.subr.bf16.mxu0 0
        %849 = vmatpush1.bf16.msra.mxu0 0
        %850 = vmatprep.subr.bf16.mxu0 0
        %851 = vmatpush1.bf16.msra.mxu0 0
        %852 = vmatprep.subr.bf16.mxu0 0
        %853 = vmatpush1.bf16.msra.mxu0 0
        %854 = vmatprep.subr.bf16.mxu0 0
        %855 = vmatpush1.bf16.msra.mxu0 0
        %856 = vmatprep.subr.bf16.mxu0 0
        %857 = vmatpush1.bf16.msra.mxu0 0
        %858 = vmatprep.subr.bf16.mxu0 0
        %859 = vmatpush1.bf16.msra.mxu0 0
        %860 = vmatprep.subr.bf16.mxu0 0
        %861 = vmatpush1.bf16.msra.mxu0 0
        %862 = vmatprep.subr.bf16.mxu0 0
        %863 = vmatpush1.bf16.msra.mxu0 0
        %864 = vmatprep.subr.bf16.mxu0 0
        %865 = vmatpush1.bf16.msra.mxu0 0
        %866 = vmatprep.subr.bf16.mxu0 0
        %867 = vmatpush1.bf16.msra.mxu0 0
        %868 = vmatprep.mubr.bf16.mxu0 0
        %869 = vmatmul.mubr.bf16.gmra.mrb[0].mxu0 %v831
        %v870 = vpop.f32.mrb[0].mxu0
        %v871 = vadd.f32 0.0, %v870
        %v872 = vpop.f32.mrb[0].mxu0
        %v873 = vpop.f32.mrb[0].mxu0
        %v874 = vpop.f32.mrb[0].mxu0
        %875 = vdwg.mxu0
        %876 = vrot.lane.b32.xlu0 %v476, 64
        %v877 = vpop.permute.xlu0 %876
        %v879 = vsel %vm479, %v730, 0
        %v882 = vsel %vm736, %v877, 0
        %884 = vmatprep.subr.bf16.mxu0 0
        %885 = vmatpush1.bf16.msra.mxu0 %v882
        %886 = vmatprep.subr.bf16.mxu0 0
        %887 = vmatpush1.bf16.msra.mxu0 0
        %888 = vmatprep.subr.bf16.mxu0 0
        %889 = vmatpush1.bf16.msra.mxu0 0
        %890 = vmatprep.subr.bf16.mxu0 0
        %891 = vmatpush1.bf16.msra.mxu0 0
        %892 = vmatprep.subr.bf16.mxu0 0
        %893 = vmatpush1.bf16.msra.mxu0 0
        %894 = vmatprep.subr.bf16.mxu0 0
        %895 = vmatpush1.bf16.msra.mxu0 0
        %896 = vmatprep.subr.bf16.mxu0 0
        %897 = vmatpush1.bf16.msra.mxu0 0
        %898 = vmatprep.subr.bf16.mxu0 0
        %899 = vmatpush1.bf16.msra.mxu0 0
        %900 = vmatprep.subr.bf16.mxu0 0
        %901 = vmatpush1.bf16.msra.mxu0 0
        %902 = vmatprep.subr.bf16.mxu0 0
        %903 = vmatpush1.bf16.msra.mxu0 0
        %904 = vmatprep.subr.bf16.mxu0 0
        %905 = vmatpush1.bf16.msra.mxu0 0
        %906 = vmatprep.subr.bf16.mxu0 0
        %907 = vmatpush1.bf16.msra.mxu0 0
        %908 = vmatprep.subr.bf16.mxu0 0
        %909 = vmatpush1.bf16.msra.mxu0 0
        %910 = vmatprep.subr.bf16.mxu0 0
        %911 = vmatpush1.bf16.msra.mxu0 0
        %912 = vmatprep.subr.bf16.mxu0 0
        %913 = vmatpush1.bf16.msra.mxu0 0
        %914 = vmatprep.subr.bf16.mxu0 0
        %915 = vmatpush1.bf16.msra.mxu0 0
        %916 = vmatprep.mubr.bf16.mxu0 0
        %917 = vmatmul.mubr.bf16.gmra.mrb[0].mxu0 %v879
        %v918 = vpop.f32.mrb[0].mxu0
        %v919 = vadd.f32 0.0, %v918
        %v920 = vpop.f32.mrb[0].mxu0
        %v921 = vpop.f32.mrb[0].mxu0
        %v922 = vpop.f32.mrb[0].mxu0
        %923 = vdwg.mxu0
        %925 = vrot.lane.b32.xlu0 %v823, 8
        %v926 = vpop.permute.xlu0 %925
        %929 = vrot.lane.b32.xlu0 %v871, 16
        %v930 = vpop.permute.xlu0 %929
        %933 = vrot.lane.b32.xlu0 %v919, 24
        %v934 = vpop.permute.xlu0 %933
        %v936 = vsel %vm479, %v775, %v926
        %vm937 = vcmask 130048
        %v938 = vsel %vm937, %v936, %v930
        %vm939 = vcmask 195584
        %v940 = vsel %vm939, %v938, %v934
        %v941 = vpack.c.bf16 %v940, %v940
        %v942 = vld [vmem:[%s3] sm:$0xf]
        %v943 = vld [vmem:[%s3 + $0x4] sm:$0xf]
        %v944 = vld [vmem:[%s3 + $0x8] sm:$0xf]
        %v945 = vld [vmem:[%s3 + $0xc] sm:$0xf]
        %v950 = vunpack.c.l.b16 %v942
        %v951 = vunpack.c.l.b16 %v943
        %v952 = vunpack.c.l.b16 %v944
        %v953 = vunpack.c.l.b16 %v945
        %v954 = vpack.c.b16 %v951, %v950
        %v955 = vpack.c.b16 %v953, %v952
        %v959 = vsel %vm423, %v941, 0
        %961 = vmatprep.subr.bf16.mxu0 0
        %962 = vmatpush1.bf16.msra.mxu0 %v954
        %963 = vmatprep.subr.bf16.mxu0 0
        %964 = vmatpush1.bf16.msra.mxu0 %v955
        %965 = vmatprep.subr.bf16.mxu0 0
        %966 = vmatpush1.bf16.msra.mxu0 0
        %967 = vmatprep.subr.bf16.mxu0 0
        %968 = vmatpush1.bf16.msra.mxu0 0
        %969 = vmatprep.subr.bf16.mxu0 0
        %970 = vmatpush1.bf16.msra.mxu0 0
        %971 = vmatprep.subr.bf16.mxu0 0
        %972 = vmatpush1.bf16.msra.mxu0 0
        %973 = vmatprep.subr.bf16.mxu0 0
        %974 = vmatpush1.bf16.msra.mxu0 0
        %975 = vmatprep.subr.bf16.mxu0 0
        %976 = vmatpush1.bf16.msra.mxu0 0
        %977 = vmatprep.subr.bf16.mxu0 0
        %978 = vmatpush1.bf16.msra.mxu0 0
        %979 = vmatprep.subr.bf16.mxu0 0
        %980 = vmatpush1.bf16.msra.mxu0 0
        %981 = vmatprep.subr.bf16.mxu0 0
        %982 = vmatpush1.bf16.msra.mxu0 0
        %983 = vmatprep.subr.bf16.mxu0 0
        %984 = vmatpush1.bf16.msra.mxu0 0
        %985 = vmatprep.subr.bf16.mxu0 0
        %986 = vmatpush1.bf16.msra.mxu0 0
        %987 = vmatprep.subr.bf16.mxu0 0
        %988 = vmatpush1.bf16.msra.mxu0 0
        %989 = vmatprep.subr.bf16.mxu0 0
        %990 = vmatpush1.bf16.msra.mxu0 0
        %991 = vmatprep.subr.bf16.mxu0 0
        %992 = vmatpush1.bf16.msra.mxu0 0
        %993 = vmatprep.mubr.bf16.mxu0 0
        %994 = vmatmul.mubr.bf16.gmra.mrb[0].mxu0 %v959
        %v995 = vpop.f32.mrb[0].mxu0
        %v996 = vadd.f32 %v405, %v995
        %v997 = vpop.f32.mrb[0].mxu0
        %v998 = vpop.f32.mrb[0].mxu0
        %v999 = vpop.f32.mrb[0].mxu0
        %1000 = vdwg.mxu0
        %v1001 = vld [vmem:[%s8] sm:$0x1]
        %v1002 = vld [vmem:[%s9] sm:$0x1]
        %v1003 = vsel %vm423, %v996, 0.0
        %1004 = vadd.xlane.f32.xlu0 %v1003
        %v1005 = vpop.xlane.xlu0 %1004
        %v1006 = vrcp.pop 32.0
        %v1007 = vmul.f32 %v1005, %v1006
        %v1008 = vsub.f32 %v996, %v1007
        %v1009 = vmul.f32 %v1008, %v1008
        %v1010 = vsel %vm423, %v1009, 0.0
        %1011 = vadd.xlane.f32.xlu0 %v1010
        %v1012 = vpop.xlane.xlu0 %1011
        %v1013 = vmul.f32 %v1012, %v1006
        %v1014 = vadd.f32 %v1013, 1e-05
        %v1015 = vrsqrt.pop %v1014
        %v1016 = vmul.f32 %v1008, %v1015
        %v1018 = vlaneseq
        %v1019 = vshrl.u32 %v1018, 7
        %v1020 = vsub.s32 0, %v1019
        %v1021 = vrot.slane %v1001, %v1020
        %v1023 = vmul.f32 %v1016, %v1021
        %v1025 = vlaneseq
        %v1026 = vshrl.u32 %v1025, 7
        %v1027 = vsub.s32 0, %v1026
        %v1028 = vrot.slane %v1002, %v1027
        %v1030 = vadd.f32 %v1023, %v1028
        %v1031 = vpack.c.bf16 %v1030, %v1030
        %v1032 = vld [vmem:[#allocation4] sm:$0xf]
        %v1033 = vld [vmem:[#allocation4 + $0x4] sm:$0xf]
        %v1034 = vld [vmem:[#allocation4 + $0x8] sm:$0xf]
        %v1035 = vld [vmem:[#allocation4 + $0xc] sm:$0xf]
        %v1036 = vld [vmem:[%s5] sm:$0x1]
        %v1038 = vlaneseq
        %v1039 = vshrl.u32 %v1038, 7
        %v1040 = vsub.s32 0, %v1039
        %v1041 = vrot.slane %v1036, %v1040
        %v1047 = vunpack.c.l.b16 %v1032
        %v1048 = vunpack.c.l.b16 %v1033
        %v1049 = vunpack.c.l.b16 %v1034
        %v1050 = vunpack.c.l.b16 %v1035
        %v1051 = vpack.c.b16 %v1048, %v1047
        %v1052 = vpack.c.b16 %v1050, %v1049
        %v1056 = vsel %vm423, %v1031, 0
        %1058 = vmatprep.subr.bf16.mxu0 0
        %1059 = vmatpush1.bf16.msra.mxu0 %v1051
        %1060 = vmatprep.subr.bf16.mxu0 0
        %1061 = vmatpush1.bf16.msra.mxu0 %v1052
        %1062 = vmatprep.subr.bf16.mxu0 0
        %1063 = vmatpush1.bf16.msra.mxu0 0
        %1064 = vmatprep.subr.bf16.mxu0 0
        %1065 = vmatpush1.bf16.msra.mxu0 0
        %1066 = vmatprep.subr.bf16.mxu0 0
        %1067 = vmatpush1.bf16.msra.mxu0 0
        %1068 = vmatprep.subr.bf16.mxu0 0
        %1069 = vmatpush1.bf16.msra.mxu0 0
        %1070 = vmatprep.subr.bf16.mxu0 0
        %1071 = vmatpush1.bf16.msra.mxu0 0
        %1072 = vmatprep.subr.bf16.mxu0 0
        %1073 = vmatpush1.bf16.msra.mxu0 0
        %1074 = vmatprep.subr.bf16.mxu0 0
        %1075 = vmatpush1.bf16.msra.mxu0 0
        %1076 = vmatprep.subr.bf16.mxu0 0
        %1077 = vmatpush1.bf16.msra.mxu0 0
        %1078 = vmatprep.subr.bf16.mxu0 0
        %1079 = vmatpush1.bf16.msra.mxu0 0
        %1080 = vmatprep.subr.bf16.mxu0 0
        %1081 = vmatpush1.bf16.msra.mxu0 0
        %1082 = vmatprep.subr.bf16.mxu0 0
        %1083 = vmatpush1.bf16.msra.mxu0 0
        %1084 = vmatprep.subr.bf16.mxu0 0
        %1085 = vmatpush1.bf16.msra.mxu0 0
        %1086 = vmatprep.subr.bf16.mxu0 0
        %1087 = vmatpush1.bf16.msra.mxu0 0
        %1088 = vmatprep.subr.bf16.mxu0 0
        %1089 = vmatpush1.bf16.msra.mxu0 0
        %1090 = vmatprep.mubr.bf16.mxu0 0
        %1091 = vmatmul.mubr.bf16.gmra.mrb[0].mxu0 %v1056
        %v1092 = vpop.f32.mrb[0].mxu0
        %v1093 = vadd.f32 %v1041, %v1092
        %v1094 = vpop.f32.mrb[0].mxu0
        %v1095 = vpop.f32.mrb[0].mxu0
        %v1096 = vpop.f32.mrb[0].mxu0
        %1097 = vdwg.mxu0
        %v1098 = vmax.f32 %v1093, 0.0
        %v1099 = vpack.c.bf16 %v1098, %v1098
        %v1100 = vld [vmem:[%s6] sm:$0xf]
        %v1101 = vld [vmem:[%s6 + $0x4] sm:$0xf]
        %v1102 = vld [vmem:[%s6 + $0x8] sm:$0xf]
        %v1103 = vld [vmem:[%s6 + $0xc] sm:$0xf]
        %v1104 = vld [vmem:[%s6 + $0x10] sm:$0xf]
        %v1105 = vld [vmem:[%s6 + $0x14] sm:$0xf]
        %v1106 = vld [vmem:[%s6 + $0x18] sm:$0xf]
        %v1107 = vld [vmem:[%s6 + $0x1c] sm:$0xf]
        %v1108 = vld [vmem:[%s7] sm:$0x1]
        %v1110 = vlaneseq
        %v1111 = vshrl.u32 %v1110, 7
        %v1112 = vsub.s32 0, %v1111
        %v1113 = vrot.slane %v1108, %v1112
        %v1123 = vunpack.c.l.b16 %v1100
        %v1124 = vunpack.c.l.b16 %v1101
        %v1125 = vunpack.c.l.b16 %v1102
        %v1126 = vunpack.c.l.b16 %v1103
        %v1127 = vunpack.c.l.b16 %v1104
        %v1128 = vunpack.c.l.b16 %v1105
        %v1129 = vunpack.c.l.b16 %v1106
        %v1130 = vunpack.c.l.b16 %v1107
        %v1131 = vpack.c.b16 %v1124, %v1123
        %v1132 = vpack.c.b16 %v1126, %v1125
        %v1133 = vpack.c.b16 %v1128, %v1127
        %v1134 = vpack.c.b16 %v1130, %v1129
        %vm1139 = vcmask 523264
        %v1141 = vsel %vm1139, %v1099, 0
        %1143 = vmatprep.subr.bf16.mxu0 0
        %1144 = vmatpush1.bf16.msra.mxu0 %v1131
        %1145 = vmatprep.subr.bf16.mxu0 0
        %1146 = vmatpush1.bf16.msra.mxu0 %v1132
        %1147 = vmatprep.subr.bf16.mxu0 0
        %1148 = vmatpush1.bf16.msra.mxu0 %v1133
        %1149 = vmatprep.subr.bf16.mxu0 0
        %1150 = vmatpush1.bf16.msra.mxu0 %v1134
        %1151 = vmatprep.subr.bf16.mxu0 0
        %1152 = vmatpush1.bf16.msra.mxu0 0
        %1153 = vmatprep.subr.bf16.mxu0 0
        %1154 = vmatpush1.bf16.msra.mxu0 0
        %1155 = vmatprep.subr.bf16.mxu0 0
        %1156 = vmatpush1.bf16.msra.mxu0 0
        %1157 = vmatprep.subr.bf16.mxu0 0
        %1158 = vmatpush1.bf16.msra.mxu0 0
        %1159 = vmatprep.subr.bf16.mxu0 0
        %1160 = vmatpush1.bf16.msra.mxu0 0
        %1161 = vmatprep.subr.bf16.mxu0 0
        %1162 = vmatpush1.bf16.msra.mxu0 0
        %1163 = vmatprep.subr.bf16.mxu0 0
        %1164 = vmatpush1.bf16.msra.mxu0 0
        %1165 = vmatprep.subr.bf16.mxu0 0
        %1166 = vmatpush1.bf16.msra.mxu0 0
        %1167 = vmatprep.subr.bf16.mxu0 0
        %1168 = vmatpush1.bf16.msra.mxu0 0
        %1169 = vmatprep.subr.bf16.mxu0 0
        %1170 = vmatpush1.bf16.msra.mxu0 0
        %1171 = vmatprep.subr.bf16.mxu0 0
        %1172 = vmatpush1.bf16.msra.mxu0 0
        %1173 = vmatprep.subr.bf16.mxu0 0
        %1174 = vmatpush1.bf16.msra.mxu0 0
        %1175 = vmatprep.mubr.bf16.mxu0 0
        %1176 = vmatmul.mubr.bf16.gmra.mrb[0].mxu0 %v1141
        %v1177 = vpop.f32.mrb[0].mxu0
        %v1178 = vadd.f32 %v1113, %v1177
        %v1179 = vpop.f32.mrb[0].mxu0
        %v1180 = vpop.f32.mrb[0].mxu0
        %v1181 = vpop.f32.mrb[0].mxu0
        %1182 = vdwg.mxu0
        %v1183 = vadd.f32 %v1178, %v1030
        %v1184 = vld [vmem:[%s10] sm:$0x1]
        %v1185 = vld [vmem:[%s11] sm:$0x1]
        %v1186 = vsel %vm423, %v1183, 0.0
        %1187 = vadd.xlane.f32.xlu0 %v1186
        %v1188 = vpop.xlane.xlu0 %1187
        %v1189 = vmul.f32 %v1188, %v1006
        %v1190 = vsub.f32 %v1183, %v1189
        %v1191 = vmul.f32 %v1190, %v1190
        %v1192 = vsel %vm423, %v1191, 0.0
        %1193 = vadd.xlane.f32.xlu0 %v1192
        %v1194 = vpop.xlane.xlu0 %1193
        %v1195 = vmul.f32 %v1194, %v1006
        %v1196 = vadd.f32 %v1195, 1e-05
        %v1197 = vrsqrt.pop %v1196
        %v1198 = vmul.f32 %v1190, %v1197
        %v1200 = vlaneseq
        %v1201 = vshrl.u32 %v1200, 7
        %v1202 = vsub.s32 0, %v1201
        %v1203 = vrot.slane %v1184, %v1202
        %v1205 = vmul.f32 %v1198, %v1203
        %v1207 = vlaneseq
        %v1208 = vshrl.u32 %v1207, 7
        %v1209 = vsub.s32 0, %v1208
        %v1210 = vrot.slane %v1185, %v1209
        %v1212 = vadd.f32 %v1205, %v1210
        %1213 = vst.msk [vmem:[%s399] sm:$0xff] %vm423, %v1212
        %s1214 = sand.u32 %s277, 1
        %s1215 = scalar_lea.sflag [#allocation6], %s1214
        %s1216 = sand.u32 %s277, 1
        %s1217 = smul.addr %s1216, 8
        %s1218 = scalar_lea.vmem [#allocation7], %s1217
        // Predicated region
        $region69: #{encoder_block_pallas.1} parent=63 // pred_check
          %p1219 = pneg %p287
        $region70: #{encoder_block_pallas.1} parent=63 // pred_check_branch
          %1221 = sbr.rel (%p1219) target = $region72
        $region71: #{encoder_block_pallas.1} parent=63 // pred_region
          %s1223 = ssub.s32 128, 128
          %1224 = vsyncadd %s1215, %s1223
          %s1225 = smul.addr %s33, 128
          %s1226 = scalar_lea.hbm %s12, %s1225
          %s1228 = sshll.u32 %s1218, 4
          %s1229 = int_to_ptr.vmem [resolvable:$true] %s1228
          %1231 = dma.vmem_to_hbm [thread:$0]  %s1229, 128, %s1226, %s1215
        $region72: #{encoder_block_pallas.1} parent=63 // pred_fallthru
          _
      $region64: #{encoder_block_pallas.1} parent=5 // pred_fallthru
        _
      %p1232 = scmp.le.s32.totalorder 2, %s28
      // Predicated region
      $region73: #{encoder_block_pallas.1} parent=5 // pred_check
        %p1233 = pneg %p1232
      $region74: #{encoder_block_pallas.1} parent=5 // pred_check_branch
        %1235 = sbr.rel (%p1233) target = $region76
      $region75: #{encoder_block_pallas.1} parent=5 // pred_region
        %s1236 = ssub.s32 %s28, 2
        // Predicated region
        $region77: #{encoder_block_pallas.1} parent=75 // pred_check
          %p1237 = pneg %p293
        $region78: #{encoder_block_pallas.1} parent=75 // pred_check_branch
          %1239 = sbr.rel (%p1237) target = $region80
        $region79: #{encoder_block_pallas.1} parent=75 // pred_region
          %s1240 = sand.u32 %s278, 1
          %s1241 = scalar_lea.sflag [#allocation6], %s1240
          %s1242 = sand.u32 %s278, 1
          %s1243 = smul.addr %s1242, 8
          %s1244 = scalar_lea.vmem [#allocation7], %s1243
          %1245 = dma.done %s1241, 128
        $region80: #{encoder_block_pallas.1} parent=75 // pred_fallthru
          _
      $region76: #{encoder_block_pallas.1} parent=5 // pred_fallthru
        _
    $region6: #{encoder_block_pallas.1} parent=1 // loop_footer
      %s32 = sadd.s32 1, %s28
    $region7: #{encoder_block_pallas.1} parent=1 // loop_footer_branch
      %27 = sbr.rel target = $region3
    $region8: #{encoder_block_pallas.1} parent=1 // loop_exit
      _
    %1246 = vsyncpa [#allocation5], 1
    %s1247 = scalar_lea.sflag [#allocation5], 1
    %1248 = vsyncpa %s1247, 1
    %1249 = vsyncpa [#allocation6], 1
    %s1250 = scalar_lea.sflag [#allocation6], 1
    %1251 = vsyncpa %s1250, 1

</llo_original>
